<compile_context>
chip_gen: v5e
topology: v5e:2x2
jax: 0.10.0
libtpu: 0.0.40
codegen_flags: <defaults>
</compile_context>

<pallas_src>
import functools
import math

import jax
import jax.numpy as jnp
import numpy as np
from jax.experimental import pallas as pl
from jax.experimental.pallas import tpu as pltpu


def _pick_key_tile(T):
    """Key-tile width: lane-dense (multiple of 128) and <= 512."""
    if T > 512 and T % 512 == 0:
        return 512
    if T > 128 and T % 128 == 0:
        return 128
    return T


def _vmem_limit_bytes(C, T, n_heads, groups, tk):
    """Per-generation VMEM budget from a residency estimate (bytes)."""
    ch = C // n_heads
    est = (
        4 * C * T * 4                                 # x + out blocks, double-buffered
        + 2 * (3 * C * C + C * C) * 2                 # bf16 qkv/proj weights, 2-buffered
        + 2 * (groups * C + C * groups + 3 * C * 128) * 4  # masks + packed col params
        + (3 * C * T + C * T) * 2                     # qkv + attn bf16 scratch
        + (3 * C * T + C * T) * 4                     # fused-qkv / proj f32 intermediates
        + 3 * tk * T * 4                              # score / prob temporaries (+slack)
        + ch * T * 4 + 2 * C * T * 4                  # flash acc + groupnorm temporaries
    )
    phys = None
    try:
        info = pltpu.get_tpu_info()
        for attr in ("vmem_capacity_bytes", "vmem_bytes", "vmem_size_bytes"):
            phys = getattr(info, attr, None)
            if phys:
                break
    except Exception:
        phys = None
    phys = int(phys) if phys else 64 * 2**20          # assume smallest (v7x per-core)
    cap = (phys * 3) // 4                             # headroom for compiler scratch
    if est > cap:
        # TODO(synk): add query (tq) tiling of the attention so the [tk, T]
        # score/prob temporaries and [C, T] residents fit on v7x (64 MiB VMEM)
        # for very large C*T instead of failing here.
        raise ValueError(
            f"AttentionBlock kernel wants ~{est / 2**20:.1f} MiB VMEM but only "
            f"{cap / 2**20:.1f} MiB are budgeted on this TPU; query tiling is "
            "needed for this shape.")
    return int(max(16 * 2**20, min(int(est * 1.5), cap)))


def _attention_block_kernel(x_ref, m_ref, mt_ref, colp_ref, wqkv_ref, wproj_ref,
                            o_ref, qkv_ref, attn_ref, *, n_heads, tk, eps):
    f32 = jnp.float32
    bf16 = jnp.bfloat16

    x = x_ref[0]                                       # [C, T] f32
    C, T = x.shape
    G = m_ref.shape[0]
    ch = C // n_heads
    num_kt = T // tk
    Cg = C // G

    # Packed per-channel column parameters (single lane-padded block).
    b_qkv = colp_ref[:, 0:1]                           # [3C, 1] (q/k rows pre-scaled)
    gamma = colp_ref[:C, 1:2]                          # [C, 1]
    beta = colp_ref[:C, 2:3]                           # [C, 1]
    b_proj = colp_ref[:C, 3:4]                         # [C, 1]

    # ---------------- GroupNorm(groups, C), eps=1e-5 -----------------------
    # Lane reductions along T first, then tiny [G,C]x[C,1]/[C,G]x[G,1] matmuls
    # with host-precomputed group-assignment masks.  Two-pass variance.
    inv_n = 1.0 / float(Cg * T)
    s1 = jnp.sum(x, axis=1, keepdims=True)                           # [C, 1]
    gmu = jnp.dot(m_ref[...], s1, preferred_element_type=f32) * inv_n  # [G, 1]
    mu_c = jnp.dot(mt_ref[...], gmu, preferred_element_type=f32)     # [C, 1]
    xc = x - mu_c                                                    # [C, T]
    s2 = jnp.sum(xc * xc, axis=1, keepdims=True)                     # [C, 1]
    gvar = jnp.dot(m_ref[...], s2, preferred_element_type=f32) * inv_n
    ginv = jax.lax.rsqrt(gvar + eps)                                 # [G, 1]
    inv_c = jnp.dot(mt_ref[...], ginv, preferred_element_type=f32)   # [C, 1]
    y = (xc * (inv_c * gamma) + beta).astype(bf16)                   # [C, T] bf16

    # ---------------- fused QKV: one [3C, C] x [C, T] matmul ---------------
    qkv = jnp.dot(wqkv_ref[...], y, preferred_element_type=f32) + b_qkv
    qkv_ref[...] = qkv.astype(bf16)                                  # [3C, T] bf16

    # ---------------- per-head key-tiled online-softmax attention ----------
    # Legacy row order: per head the rows are [q(ch), k(ch), v(ch)].
    def head_body(h, carry):
        q_start = pl.multiple_of(h * 3 * ch, ch)
        k_start = pl.multiple_of(h * 3 * ch + ch, ch)
        v_start = pl.multiple_of(h * 3 * ch + 2 * ch, ch)
        q = qkv_ref[pl.ds(q_start, ch), :]                           # [ch, T] bf16

        def kv_body(j, c):
            m_prev, l_prev, acc_prev = c
            col = pl.multiple_of(j * tk, tk)
            k_t = qkv_ref[pl.ds(k_start, ch), pl.ds(col, tk)]        # [ch, tk]
            v_t = qkv_ref[pl.ds(v_start, ch), pl.ds(col, tk)]        # [ch, tk]
            # s[s', t] = sum_c k[c, s'] * q[c, t]
            s = jax.lax.dot_general(k_t, q, (((0,), (0,)), ((), ())),
                                    preferred_element_type=f32)      # [tk, T]
            m_new = jnp.maximum(m_prev, jnp.max(s, axis=0, keepdims=True))
            alpha = jnp.exp(m_prev - m_new)                          # [1, T]
            p = jnp.exp(s - m_new)                                   # [tk, T] f32
            l_new = alpha * l_prev + jnp.sum(p, axis=0, keepdims=True)
            # pv[c, t] = sum_s' v[c, s'] * p[s', t]
            pv = jnp.dot(v_t, p.astype(bf16), preferred_element_type=f32)  # [ch, T]
            return m_new, l_new, alpha * acc_prev + pv

        m0 = jnp.full((1, T), -1e30, dtype=f32)   # finite init (robust vs -inf)
        l0 = jnp.zeros((1, T), f32)
        a0 = jnp.zeros((ch, T), f32)
        _, l_f, acc_f = jax.lax.fori_loop(0, num_kt, kv_body, (m0, l0, a0))

        out_start = pl.multiple_of(h * ch, ch)
        attn_ref[pl.ds(out_start, ch), :] = (acc_f * pl.reciprocal(l_f)).astype(bf16)
        return carry

    jax.lax.fori_loop(0, n_heads, head_body, 0)

    # ---------------- single proj_out matmul + bias + residual -------------
    proj = jnp.dot(wproj_ref[...], attn_ref[...], preferred_element_type=f32)
    o_ref[0] = x + proj + b_proj


def attention_block_pallas(x, params, *, n_heads, groups=32, eps=1e-5):
    B, C, H, W = x.shape
    T = H * W
    assert C % n_heads == 0 and C % groups == 0
    ch = C // n_heads
    assert ch % 8 == 0, "head width must be a multiple of the 8-row sublane tile"
    # TODO(synk): pack multiple batch elements per block when T < 128 so the
    # lane dimension stays dense (avoids masked partial stores).
    tk = _pick_key_tile(T)

    x3 = x.reshape(B, C, T).astype(jnp.float32)

    # Group-assignment masks, precomputed on the host (constant inputs).
    group_id = np.arange(C) // (C // groups)
    M_np = (np.arange(groups)[:, None] == group_id[None, :]).astype(np.float32)
    M = jnp.asarray(M_np)                              # [G, C]
    Mt = jnp.asarray(M_np.T)                           # [C, G]

    # qkv weight/bias in legacy (head, {q,k,v}, ch) row order; fold the
    # 1/sqrt(sqrt(ch)) attention scale into the q and k rows (weights+biases).
    scale = float(ch) ** -0.25
    qk_scale = jnp.array([scale, scale, 1.0], jnp.float32).reshape(1, 3, 1, 1)
    wqkv = (params["w_qkv"].astype(jnp.float32).reshape(n_heads, 3, ch, C)
            * qk_scale).reshape(3 * C, C).astype(jnp.bfloat16)
    bqkv = (params["b_qkv"].astype(jnp.float32).reshape(n_heads, 3, ch, 1)
            * qk_scale).reshape(3 * C)

    # Pack all lane-1 per-channel params into ONE lane-padded block:
    #   col 0 = scaled qkv bias (3C rows); cols 1..3 = gamma / beta / proj bias.
    colp = jnp.zeros((3 * C, 4), jnp.float32)
    colp = colp.at[:, 0].set(bqkv)
    colp = colp.at[:C, 1].set(params["gamma"].astype(jnp.float32).reshape(C))
    colp = colp.at[:C, 2].set(params["beta"].astype(jnp.float32).reshape(C))
    colp = colp.at[:C, 3].set(params["b_proj"].astype(jnp.float32).reshape(C))

    wproj = params["w_proj"].reshape(C, C).astype(jnp.bfloat16)

    kernel = functools.partial(_attention_block_kernel,
                               n_heads=n_heads, tk=tk, eps=eps)
    vmem_limit = _vmem_limit_bytes(C, T, n_heads, groups, tk)

    out = pl.pallas_call(
        kernel,
        out_shape=jax.ShapeDtypeStruct((B, C, T), jnp.float32),
        grid_spec=pltpu.PrefetchScalarGridSpec(
            num_scalar_prefetch=0,
            grid=(B,),
            in_specs=[
                pl.BlockSpec((1, C, T), lambda b: (b, 0, 0)),        # x
                pl.BlockSpec((groups, C), lambda b: (0, 0)),         # M
                pl.BlockSpec((C, groups), lambda b: (0, 0)),         # Mt
                pl.BlockSpec((3 * C, 4), lambda b: (0, 0)),          # packed col params
                pl.BlockSpec((3 * C, C), lambda b: (0, 0)),          # w_qkv (bf16, scaled)
                pl.BlockSpec((C, C), lambda b: (0, 0)),              # w_proj (bf16)
            ],
            out_specs=pl.BlockSpec((1, C, T), lambda b: (b, 0, 0)),
            scratch_shapes=[
                pltpu.VMEM((3 * C, T), jnp.bfloat16),                # fused qkv
                pltpu.VMEM((C, T), jnp.bfloat16),                    # per-head attn out
            ],
        ),
        compiler_params=pltpu.CompilerParams(
            dimension_semantics=("parallel",),
            vmem_limit_bytes=vmem_limit),
    )(x3, M, Mt, colp, wqkv, wproj)
    return out.reshape(B, C, H, W)


def attention_block_reference(x, params, *, n_heads, groups=32, eps=1e-5):
    """Pure-JAX f32 reference mirroring the PyTorch AttentionBlock._forward."""
    B, C, H, W = x.shape
    T = H * W
    xf = x.reshape(B, C, T).astype(jnp.float32)
    # GroupNorm
    xg = xf.reshape(B, groups, (C // groups) * T)
    mu = xg.mean(-1, keepdims=True)
    var = xg.var(-1, keepdims=True)
    xn = ((xg - mu) / jnp.sqrt(var + eps)).reshape(B, C, T)
    y = xn * params["gamma"].reshape(1, C, 1) + params["beta"].reshape(1, C, 1)
    # qkv 1x1 conv
    qkv = jnp.einsum("oc,bct->bot", params["w_qkv"], y) + params["b_qkv"].reshape(1, -1, 1)
    # QKVAttentionLegacy
    ch = C // n_heads
    qkv = qkv.reshape(B * n_heads, 3 * ch, T)
    q, k, v = qkv[:, :ch], qkv[:, ch:2 * ch], qkv[:, 2 * ch:]
    scale = 1.0 / math.sqrt(math.sqrt(ch))
    w = jnp.einsum("bct,bcs->bts", q * scale, k * scale)
    w = jax.nn.softmax(w, axis=-1)
    a = jnp.einsum("bts,bcs->bct", w, v).reshape(B, C, T)
    # proj_out + residual
    h = jnp.einsum("oc,bct->bot", params["w_proj"], a) + params["b_proj"].reshape(1, C, 1)
    return (xf + h).reshape(B, C, H, W)


if __name__ == "__main__":
    B, C, H, W = 2, 64, 16, 16     # T = 256 (lane-dense, multiple of 128)
    num_heads = 2                  # == channels // num_head_channels (32)
    groups = 32                    # normalization(channels) -> GroupNorm(32, C)

    key = jax.random.PRNGKey(0)
    k1, k2, k3, k4, k5, k6, kx = jax.random.split(key, 7)
    params = {
        "gamma": 1.0 + 0.1 * jax.random.normal(k1, (C,), jnp.float32),
        "beta": 0.1 * jax.random.normal(k2, (C,), jnp.float32),
        "w_qkv": 0.05 * jax.random.normal(k3, (3 * C, C), jnp.float32),
        "b_qkv": 0.02 * jax.random.normal(k4, (3 * C,), jnp.float32),
        # NOTE: original module zero-inits proj_out (zero_module); small random
        # weights are used here so the full attention path is exercised.
        "w_proj": 0.05 * jax.random.normal(k5, (C, C), jnp.float32),
        "b_proj": 0.02 * jax.random.normal(k6, (C,), jnp.float32),
    }
    x = jax.random.normal(kx, (B, C, H, W), jnp.float32)

    out = attention_block_pallas(x, params, n_heads=num_heads, groups=groups)
    out = jax.block_until_ready(out)

    ref = attention_block_reference(x, params, n_heads=num_heads, groups=groups)
    # bf16 MXU operands (f32 accumulation) => looser tolerance vs f32 reference.
    np.testing.assert_allclose(np.asarray(out), np.asarray(ref), rtol=2e-2, atol=2e-2)

    print("KERNEL_OK")
</pallas_src>

<mosaic_0001>
module attributes {stable_mosaic.version = 11 : i64} {
  func.func @_attention_block_kernel(%arg0: i32, %arg1: memref<1x64x256xf32, #tpu.memory_space<vmem>>, %arg2: memref<32x64xf32, #tpu.memory_space<vmem>>, %arg3: memref<64x32xf32, #tpu.memory_space<vmem>>, %arg4: memref<192x4xf32, #tpu.memory_space<vmem>>, %arg5: memref<192x64xbf16, #tpu.memory_space<vmem>>, %arg6: memref<64x64xbf16, #tpu.memory_space<vmem>>, %arg7: memref<1x64x256xf32, #tpu.memory_space<vmem>>, %arg8: memref<192x256xbf16, #tpu.memory_space<vmem>>, %arg9: memref<64x256xbf16, #tpu.memory_space<vmem>>) attributes {dimension_semantics = [#tpu.dimension_semantics<parallel>], iteration_bounds = array<i64: 2>, scalar_prefetch = 0 : i64, scratch_operands = 2 : i64, tpu.core_type = #tpu.core_type<tc>, window_params = [{transform_indices = @transform_0, window_bounds = array<i64: 1, 64, 256>}, {pipeline_mode = #tpu.pipeline_mode<synchronous>, transform_indices = @transform_1, window_bounds = array<i64: 32, 64>}, {pipeline_mode = #tpu.pipeline_mode<synchronous>, transform_indices = @transform_2, window_bounds = array<i64: 64, 32>}, {pipeline_mode = #tpu.pipeline_mode<synchronous>, transform_indices = @transform_3, window_bounds = array<i64: 192, 4>}, {pipeline_mode = #tpu.pipeline_mode<synchronous>, transform_indices = @transform_4, window_bounds = array<i64: 192, 64>}, {pipeline_mode = #tpu.pipeline_mode<synchronous>, transform_indices = @transform_5, window_bounds = array<i64: 64, 64>}, {transform_indices = @transform_6, window_bounds = array<i64: 1, 64, 256>}]} {
    %c0 = arith.constant 0 : index
    %c0_0 = arith.constant 0 : index
    %c0_1 = arith.constant 0 : index
    %0 = vector.load %arg1[%c0, %c0_0, %c0_1] : memref<1x64x256xf32, #tpu.memory_space<vmem>>, vector<1x64x256xf32>
    %1 = vector.shape_cast %0 : vector<1x64x256xf32> to vector<64x256xf32>
    %c0_2 = arith.constant 0 : index
    %c0_3 = arith.constant 0 : index
    %2 = vector.load %arg4[%c0_2, %c0_3] : memref<192x4xf32, #tpu.memory_space<vmem>>, vector<192x1xf32>
    %c0_4 = arith.constant 0 : index
    %c1 = arith.constant 1 : index
    %3 = vector.load %arg4[%c0_4, %c1] : memref<192x4xf32, #tpu.memory_space<vmem>>, vector<64x1xf32>
    %c0_5 = arith.constant 0 : index
    %c2 = arith.constant 2 : index
    %4 = vector.load %arg4[%c0_5, %c2] : memref<192x4xf32, #tpu.memory_space<vmem>>, vector<64x1xf32>
    %c0_6 = arith.constant 0 : index
    %c3 = arith.constant 3 : index
    %5 = vector.load %arg4[%c0_6, %c3] : memref<192x4xf32, #tpu.memory_space<vmem>>, vector<64x1xf32>
    %cst = arith.constant dense<0.000000e+00> : vector<64xf32>
    %6 = vector.multi_reduction <add>, %1, %cst [1] : vector<64x256xf32> to vector<64xf32>
    %7 = vector.shape_cast %6 : vector<64xf32> to vector<64x1xf32>
    %c0_7 = arith.constant 0 : index
    %c0_8 = arith.constant 0 : index
    %8 = vector.load %arg2[%c0_7, %c0_8] : memref<32x64xf32, #tpu.memory_space<vmem>>, vector<32x64xf32>
    %cst_9 = arith.constant dense<0.000000e+00> : vector<32x1xf32>
    %9 = tpu.matmul %8, %7, %cst_9 {dimension_numbers = #tpu.dot_dimension_numbers<[1], [0], [0], [1], [0, 0, 1, 1], [], []>} : vector<32x64xf32>, vector<64x1xf32>, vector<32x1xf32> -> vector<32x1xf32>
    %cst_10 = arith.constant 0.001953125 : f32
    %10 = vector.broadcast %cst_10 : f32 to vector<32x1xf32>
    %11 = arith.mulf %9, %10 : vector<32x1xf32>
    %c0_11 = arith.constant 0 : index
    %c0_12 = arith.constant 0 : index
    %12 = vector.load %arg3[%c0_11, %c0_12] : memref<64x32xf32, #tpu.memory_space<vmem>>, vector<64x32xf32>
    %cst_13 = arith.constant dense<0.000000e+00> : vector<64x1xf32>
    %13 = tpu.matmul %12, %11, %cst_13 {dimension_numbers = #tpu.dot_dimension_numbers<[1], [0], [0], [1], [0, 0, 1, 1], [], []>} : vector<64x32xf32>, vector<32x1xf32>, vector<64x1xf32> -> vector<64x1xf32>
    %14 = vector.broadcast %13 : vector<64x1xf32> to vector<64x256xf32>
    %15 = arith.subf %1, %14 : vector<64x256xf32>
    %16 = arith.mulf %15, %15 : vector<64x256xf32>
    %cst_14 = arith.constant dense<0.000000e+00> : vector<64xf32>
    %17 = vector.multi_reduction <add>, %16, %cst_14 [1] : vector<64x256xf32> to vector<64xf32>
    %18 = vector.shape_cast %17 : vector<64xf32> to vector<64x1xf32>
    %c0_15 = arith.constant 0 : index
    %c0_16 = arith.constant 0 : index
    %19 = vector.load %arg2[%c0_15, %c0_16] : memref<32x64xf32, #tpu.memory_space<vmem>>, vector<32x64xf32>
    %cst_17 = arith.constant dense<0.000000e+00> : vector<32x1xf32>
    %20 = tpu.matmul %19, %18, %cst_17 {dimension_numbers = #tpu.dot_dimension_numbers<[1], [0], [0], [1], [0, 0, 1, 1], [], []>} : vector<32x64xf32>, vector<64x1xf32>, vector<32x1xf32> -> vector<32x1xf32>
    %cst_18 = arith.constant 0.001953125 : f32
    %21 = vector.broadcast %cst_18 : f32 to vector<32x1xf32>
    %22 = arith.mulf %20, %21 : vector<32x1xf32>
    %cst_19 = arith.constant 9.99999974E-6 : f32
    %23 = vector.broadcast %cst_19 : f32 to vector<32x1xf32>
    %24 = arith.addf %22, %23 : vector<32x1xf32>
    %25 = math.rsqrt %24 : vector<32x1xf32>
    %c0_20 = arith.constant 0 : index
    %c0_21 = arith.constant 0 : index
    %26 = vector.load %arg3[%c0_20, %c0_21] : memref<64x32xf32, #tpu.memory_space<vmem>>, vector<64x32xf32>
    %cst_22 = arith.constant dense<0.000000e+00> : vector<64x1xf32>
    %27 = tpu.matmul %26, %25, %cst_22 {dimension_numbers = #tpu.dot_dimension_numbers<[1], [0], [0], [1], [0, 0, 1, 1], [], []>} : vector<64x32xf32>, vector<32x1xf32>, vector<64x1xf32> -> vector<64x1xf32>
    %28 = arith.mulf %27, %3 : vector<64x1xf32>
    %29 = vector.broadcast %28 : vector<64x1xf32> to vector<64x256xf32>
    %30 = arith.mulf %15, %29 : vector<64x256xf32>
    %31 = vector.broadcast %4 : vector<64x1xf32> to vector<64x256xf32>
    %32 = arith.addf %30, %31 : vector<64x256xf32>
    %33 = arith.truncf %32 : vector<64x256xf32> to vector<64x256xbf16>
    %c0_23 = arith.constant 0 : index
    %c0_24 = arith.constant 0 : index
    %34 = vector.load %arg5[%c0_23, %c0_24] : memref<192x64xbf16, #tpu.memory_space<vmem>>, vector<192x64xbf16>
    %cst_25 = arith.constant dense<0.000000e+00> : vector<192x256xf32>
    %35 = tpu.matmul %34, %33, %cst_25 {dimension_numbers = #tpu.dot_dimension_numbers<[1], [0], [0], [1], [0, 0, 1, 1], [], []>} : vector<192x64xbf16>, vector<64x256xbf16>, vector<192x256xf32> -> vector<192x256xf32>
    %36 = vector.broadcast %2 : vector<192x1xf32> to vector<192x256xf32>
    %37 = arith.addf %35, %36 : vector<192x256xf32>
    %38 = arith.truncf %37 : vector<192x256xf32> to vector<192x256xbf16>
    %c0_26 = arith.constant 0 : index
    %c0_27 = arith.constant 0 : index
    %39 = vector.load %arg8[%c0_26, %c0_27] : memref<192x256xbf16, #tpu.memory_space<vmem>>, vector<192x256xbf16>
    tpu.vector_store %arg8[%c0_26, %c0_27], %38 {strides = array<i32>} : memref<192x256xbf16, #tpu.memory_space<vmem>>, vector<192x256xbf16>,
    %c0_i32 = arith.constant 0 : i32
    %c2_i32 = arith.constant 2 : i32
    %40 = arith.addi %c0_i32, %c2_i32 : i32
    %c1_i32 = arith.constant 1 : i32
    scf.for %arg10 = %c0_i32 to %40 step %c1_i32  : i32 {
      %c3_i32 = arith.constant 3 : i32
      %50 = arith.muli %arg10, %c3_i32 : i32
      %c32_i32 = arith.constant 32 : i32
      %51 = arith.muli %50, %c32_i32 : i32
      %52 = tpu.assume_multiple %51, 32 : i32
      %c3_i32_37 = arith.constant 3 : i32
      %53 = arith.muli %arg10, %c3_i32_37 : i32
      %c32_i32_38 = arith.constant 32 : i32
      %54 = arith.muli %53, %c32_i32_38 : i32
      %c32_i32_39 = arith.constant 32 : i32
      %55 = arith.addi %54, %c32_i32_39 : i32
      %56 = tpu.assume_multiple %55, 32 : i32
      %c3_i32_40 = arith.constant 3 : i32
      %57 = arith.muli %arg10, %c3_i32_40 : i32
      %c32_i32_41 = arith.constant 32 : i32
      %58 = arith.muli %57, %c32_i32_41 : i32
      %c64_i32 = arith.constant 64 : i32
      %59 = arith.addi %58, %c64_i32 : i32
      %60 = tpu.assume_multiple %59, 32 : i32
      %61 = arith.index_cast %52 : i32 to index
      %c0_42 = arith.constant 0 : index
      %62 = vector.load %arg8[%61, %c0_42] : memref<192x256xbf16, #tpu.memory_space<vmem>>, vector<32x256xbf16>
      %cst_43 = arith.constant -1.000000e+30 : f32
      %63 = vector.broadcast %cst_43 : f32 to vector<1x256xf32>
      %cst_44 = arith.constant 0.000000e+00 : f32
      %64 = vector.broadcast %cst_44 : f32 to vector<1x256xf32>
      %cst_45 = arith.constant 0.000000e+00 : f32
      %65 = vector.broadcast %cst_45 : f32 to vector<32x256xf32>
      %c0_i32_46 = arith.constant 0 : i32
      %c2_i32_47 = arith.constant 2 : i32
      %66 = arith.addi %c0_i32_46, %c2_i32_47 : i32
      %c1_i32_48 = arith.constant 1 : i32
      %67:3 = scf.for %arg11 = %c0_i32_46 to %66 step %c1_i32_48 iter_args(%arg12 = %63, %arg13 = %64, %arg14 = %65) -> (vector<1x256xf32>, vector<1x256xf32>, vector<32x256xf32>)  : i32 {
        %c128_i32 = arith.constant 128 : i32
        %76 = arith.muli %arg11, %c128_i32 : i32
        %77 = tpu.assume_multiple %76, 128 : i32
        %78 = arith.index_cast %56 : i32 to index
        %79 = arith.index_cast %77 : i32 to index
        %80 = vector.load %arg8[%78, %79] : memref<192x256xbf16, #tpu.memory_space<vmem>>, vector<32x128xbf16>
        %81 = arith.index_cast %60 : i32 to index
        %82 = arith.index_cast %77 : i32 to index
        %83 = vector.load %arg8[%81, %82] : memref<192x256xbf16, #tpu.memory_space<vmem>>, vector<32x128xbf16>
        %cst_52 = arith.constant dense<0.000000e+00> : vector<128x256xf32>
        %84 = tpu.matmul %80, %62, %cst_52 {dimension_numbers = #tpu.dot_dimension_numbers<[0], [0], [1], [1], [0, 1, 1, 1], [], []>} : vector<32x128xbf16>, vector<32x256xbf16>, vector<128x256xf32> -> vector<128x256xf32>
        %cst_53 = arith.constant dense<0xFF800000> : vector<256xf32>
        %85 = vector.multi_reduction <maximumf>, %84, %cst_53 [0] : vector<128x256xf32> to vector<256xf32>
        %86 = vector.shape_cast %85 : vector<256xf32> to vector<1x256xf32>
        %87 = arith.maximumf %arg12, %86 : vector<1x256xf32>
        %88 = arith.subf %arg12, %87 : vector<1x256xf32>
        %89 = math.exp %88 : vector<1x256xf32>
        %90 = vector.broadcast %87 : vector<1x256xf32> to vector<128x256xf32>
        %91 = arith.subf %84, %90 : vector<128x256xf32>
        %92 = math.exp %91 : vector<128x256xf32>
        %93 = arith.mulf %89, %arg13 : vector<1x256xf32>
        %cst_54 = arith.constant dense<0.000000e+00> : vector<256xf32>
        %94 = vector.multi_reduction <add>, %92, %cst_54 [0] : vector<128x256xf32> to vector<256xf32>
        %95 = vector.shape_cast %94 : vector<256xf32> to vector<1x256xf32>
        %96 = arith.addf %93, %95 : vector<1x256xf32>
        %97 = arith.truncf %92 : vector<128x256xf32> to vector<128x256xbf16>
        %cst_55 = arith.constant dense<0.000000e+00> : vector<32x256xf32>
        %98 = tpu.matmul %83, %97, %cst_55 {dimension_numbers = #tpu.dot_dimension_numbers<[1], [0], [0], [1], [0, 0, 1, 1], [], []>} : vector<32x128xbf16>, vector<128x256xbf16>, vector<32x256xf32> -> vector<32x256xf32>
        %99 = vector.broadcast %89 : vector<1x256xf32> to vector<32x256xf32>
        %100 = arith.mulf %99, %arg14 : vector<32x256xf32>
        %101 = arith.addf %100, %98 : vector<32x256xf32>
        scf.yield %87, %96, %101 : vector<1x256xf32>, vector<1x256xf32>, vector<32x256xf32>
      }
      %c2_i32_49 = arith.constant 2 : i32
      %c32_i32_50 = arith.constant 32 : i32
      %68 = arith.muli %arg10, %c32_i32_50 : i32
      %69 = tpu.assume_multiple %68, 32 : i32
      %70 = tpu.reciprocal %67#1 : vector<1x256xf32> -> vector<1x256xf32>
      %71 = vector.broadcast %70 : vector<1x256xf32> to vector<32x256xf32>
      %72 = arith.mulf %67#2, %71 : vector<32x256xf32>
      %73 = arith.truncf %72 : vector<32x256xf32> to vector<32x256xbf16>
      %74 = arith.index_cast %69 : i32 to index
      %c0_51 = arith.constant 0 : index
      %75 = vector.load %arg9[%74, %c0_51] : memref<64x256xbf16, #tpu.memory_space<vmem>>, vector<32x256xbf16>
      tpu.vector_store %arg9[%74, %c0_51], %73 {strides = array<i32>} : memref<64x256xbf16, #tpu.memory_space<vmem>>, vector<32x256xbf16>,
    }
    %c2_i32_28 = arith.constant 2 : i32
    %c0_29 = arith.constant 0 : index
    %c0_30 = arith.constant 0 : index
    %41 = vector.load %arg6[%c0_29, %c0_30] : memref<64x64xbf16, #tpu.memory_space<vmem>>, vector<64x64xbf16>
    %c0_31 = arith.constant 0 : index
    %c0_32 = arith.constant 0 : index
    %42 = vector.load %arg9[%c0_31, %c0_32] : memref<64x256xbf16, #tpu.memory_space<vmem>>, vector<64x256xbf16>
    %cst_33 = arith.constant dense<0.000000e+00> : vector<64x256xf32>
    %43 = tpu.matmul %41, %42, %cst_33 {dimension_numbers = #tpu.dot_dimension_numbers<[1], [0], [0], [1], [0, 0, 1, 1], [], []>} : vector<64x64xbf16>, vector<64x256xbf16>, vector<64x256xf32> -> vector<64x256xf32>
    %44 = arith.addf %1, %43 : vector<64x256xf32>
    %45 = vector.broadcast %5 : vector<64x1xf32> to vector<64x256xf32>
    %46 = arith.addf %44, %45 : vector<64x256xf32>
    %c0_34 = arith.constant 0 : index
    %c0_35 = arith.constant 0 : index
    %c0_36 = arith.constant 0 : index
    %47 = vector.load %arg7[%c0_34, %c0_35, %c0_36] : memref<1x64x256xf32, #tpu.memory_space<vmem>>, vector<1x64x256xf32>
    %48 = vector.shape_cast %47 : vector<1x64x256xf32> to vector<64x256xf32>
    %49 = vector.shape_cast %46 : vector<64x256xf32> to vector<1x64x256xf32>
    tpu.vector_store %arg7[%c0_34, %c0_35, %c0_36], %49 {strides = array<i32>} : memref<1x64x256xf32, #tpu.memory_space<vmem>>, vector<1x64x256xf32>,
    return
  }
  func.func @transform_0(%arg0: i32) -> (i32, i32, i32) {
    %c0_i32 = arith.constant 0 : i32
    %c0_i32_0 = arith.constant 0 : i32
    %c0_i32_1 = arith.constant 0 : i32
    return %arg0, %c0_i32, %c0_i32_0 : i32, i32, i32
  }
  func.func @transform_1(%arg0: i32) -> (i32, i32) {
    %c0_i32 = arith.constant 0 : i32
    %c0_i32_0 = arith.constant 0 : i32
    %c0_i32_1 = arith.constant 0 : i32
    return %c0_i32, %c0_i32_0 : i32, i32
  }
  func.func @transform_2(%arg0: i32) -> (i32, i32) {
    %c0_i32 = arith.constant 0 : i32
    %c0_i32_0 = arith.constant 0 : i32
    %c0_i32_1 = arith.constant 0 : i32
    return %c0_i32, %c0_i32_0 : i32, i32
  }
  func.func @transform_3(%arg0: i32) -> (i32, i32) {
    %c0_i32 = arith.constant 0 : i32
    %c0_i32_0 = arith.constant 0 : i32
    %c0_i32_1 = arith.constant 0 : i32
    return %c0_i32, %c0_i32_0 : i32, i32
  }
  func.func @transform_4(%arg0: i32) -> (i32, i32) {
    %c0_i32 = arith.constant 0 : i32
    %c0_i32_0 = arith.constant 0 : i32
    %c0_i32_1 = arith.constant 0 : i32
    return %c0_i32, %c0_i32_0 : i32, i32
  }
  func.func @transform_5(%arg0: i32) -> (i32, i32) {
    %c0_i32 = arith.constant 0 : i32
    %c0_i32_0 = arith.constant 0 : i32
    %c0_i32_1 = arith.constant 0 : i32
    return %c0_i32, %c0_i32_0 : i32, i32
  }
  func.func @transform_6(%arg0: i32) -> (i32, i32, i32) {
    %c0_i32 = arith.constant 0 : i32
    %c0_i32_0 = arith.constant 0 : i32
    %c0_i32_1 = arith.constant 0 : i32
    return %arg0, %c0_i32, %c0_i32_0 : i32, i32, i32
  }
}

</mosaic_0001>

<llo_original>
// kernel: tpu_custom_call.1
$region0: #{tpu_custom_call.1}
  #allocation0 [shape = 'u32[]', space=smem, size = 0x4, offset = 0x4, fixed_abs, tag = 'smem constant byte address 0x4 - core index']
  #allocation1 [shape = 'u32[72,128]{1,0:T(1,128)}', space=vmem, size = 0x9000, scoped, tag = 'internal scratch']
  #allocation2 [shape = 'bf16[192,256]{1,0:T(8,128)(2,1)}', space=vmem, size = 0x18000, scoped, tag = 'scratch operand']
  #allocation3 [shape = 'bf16[64,256]{1,0:T(8,128)(2,1)}', space=vmem, size = 0x8000, scoped, tag = 'scratch operand']
  %s0 = inlined_call_operand.vmem [shape: f32[2,64,256], index: 0, kind: input, shape index: {}]
  %s1 = inlined_call_operand.vmem [shape: f32[32,64], index: 1, kind: input, shape index: {}]
  %s2 = inlined_call_operand.vmem [shape: f32[64,32], index: 2, kind: input, shape index: {}]
  %s3 = inlined_call_operand.vmem [shape: f32[192,4], index: 3, kind: input, shape index: {}]
  %s4 = inlined_call_operand.vmem [shape: bf16[192,64], index: 4, kind: input, shape index: {}]
  %s5 = inlined_call_operand.vmem [shape: bf16[64,64], index: 5, kind: input, shape index: {}]
  %s6 = inlined_call_operand.hbm [shape: f32[2,64,256], index: 6, kind: output, shape index: {}]
  %s7 = sld [smem:[#allocation0]]
  $region71: #{tpu_custom_call.1} parent=0
    _
  %s9 = ssub.s32 1, %s7
  %s10 = scalar_select 0, %s9, %s7
  $region1: #{tpu_custom_call.1} parent=0
    #allocation4 [shape = 'u8[131072]{0}', space=vmem, size = 0x20000, scoped, tag = 'output window, operand 0']
    #allocation5 [shape = 's32[2]{0}', space=sflag, size = 0x8, scoped, tag = 'scoped memory for tpu_custom_call.1']
    %11 = vsyncpa [#allocation5], 0
    %s12 = scalar_lea.sflag [#allocation5], 1
    %13 = vsyncpa %s12, 0
    loop: start=0, step=1, limit=4
    $region2: #{tpu_custom_call.1} parent=1 // loop_pre_header
      _
    $region3: #{tpu_custom_call.1} parent=1 // loop_header
      %s15 = sphi 0, %s19
      %p16 = scmp.ge.s32.totalorder %s15, 4
      %s25 = sphi 0, %s27
      %s28 = sphi 0, %s25
      %s29 = sphi 0, %s28
      %s45 = sphi 0, %s29
      %s49 = sphi 0, %s49
      %s51 = sphi 0, %s49
      %s52 = sphi 0, %s51
      %s66 = sphi 0, %s52
      %s70 = sphi 0, %s70
      %s72 = sphi 0, %s70
      %s73 = sphi 0, %s72
      %s87 = sphi 0, %s73
      %s91 = sphi 0, %s91
      %s93 = sphi 0, %s91
      %s94 = sphi 0, %s93
      %s108 = sphi 0, %s94
      %s112 = sphi 0, %s112
      %s114 = sphi 0, %s112
      %s115 = sphi 0, %s114
      %s129 = sphi 0, %s115
      %s133 = sphi 0, %s133
      %s135 = sphi 0, %s133
      %s136 = sphi 0, %s135
      %s150 = sphi 0, %s136
      %s156 = sphi 0, %s158
      %s159 = sphi 0, %s156
      %s160 = sphi 0, %s159
      %s176 = sphi 0, %s160
    $region4: #{tpu_custom_call.1} parent=1 // loop_header_branch
      %18 = sbr.rel (%p16) target = $region8
    $region5: #{tpu_custom_call.1} parent=1 // loop_body
      %s20 = ssub.s32 %s15, 1
      %s21 = ssub.s32 %s15, 2
      %s22 = sadd.s32 %s15, 1
      %s23 = ssub.s32 %s15, %s22
      %p24 = scmp.eq.s32.totalorder %s23, 0
      %s26 = sadd.s32 %s25, 1
      %s27 = scalar_select %p24, %s25, %s26
      %p30 = pneg %p24
      %p31 = scmp.eq.s32.totalorder %s15, 1
      %p32 = por %p30, %p31
      %p33 = scmp.ne.s32.totalorder %s25, %s28
      %p34 = scmp.eq.s32.totalorder %s15, 0
      %p35 = por %p33, %p34
      %p36 = scmp.ne.s32.totalorder %s25, %s28
      %p37 = scmp.eq.s32.totalorder %s20, 1
      %p38 = por %p36, %p37
      %p39 = scmp.ne.s32.totalorder %s28, %s29
      %p40 = scmp.eq.s32.totalorder %s20, 0
      %p41 = por %p39, %p40
      %p42 = scmp.ne.s32.totalorder %s28, %s29
      %p43 = scmp.eq.s32.totalorder %s21, 1
      %p44 = por %p42, %p43
      %p46 = scmp.ne.s32.totalorder %s29, %s45
      %p47 = scmp.eq.s32.totalorder %s21, 0
      %p48 = por %p46, %p47
      %s50 = sadd.s32 %s49, 1
      %p53 = scmp.eq.s32.totalorder %s15, 1
      %p54 = scmp.ne.s32.totalorder %s49, %s51
      %p55 = scmp.eq.s32.totalorder %s15, 0
      %p56 = por %p54, %p55
      %p57 = scmp.ne.s32.totalorder %s49, %s51
      %p58 = scmp.eq.s32.totalorder %s20, 1
      %p59 = por %p57, %p58
      %p60 = scmp.ne.s32.totalorder %s51, %s52
      %p61 = scmp.eq.s32.totalorder %s20, 0
      %p62 = por %p60, %p61
      %p63 = scmp.ne.s32.totalorder %s51, %s52
      %p64 = scmp.eq.s32.totalorder %s21, 1
      %p65 = por %p63, %p64
      %p67 = scmp.ne.s32.totalorder %s52, %s66
      %p68 = scmp.eq.s32.totalorder %s21, 0
      %p69 = por %p67, %p68
      %s71 = sadd.s32 %s70, 1
      %p74 = scmp.eq.s32.totalorder %s15, 1
      %p75 = scmp.ne.s32.totalorder %s70, %s72
      %p76 = scmp.eq.s32.totalorder %s15, 0
      %p77 = por %p75, %p76
      %p78 = scmp.ne.s32.totalorder %s70, %s72
      %p79 = scmp.eq.s32.totalorder %s20, 1
      %p80 = por %p78, %p79
      %p81 = scmp.ne.s32.totalorder %s72, %s73
      %p82 = scmp.eq.s32.totalorder %s20, 0
      %p83 = por %p81, %p82
      %p84 = scmp.ne.s32.totalorder %s72, %s73
      %p85 = scmp.eq.s32.totalorder %s21, 1
      %p86 = por %p84, %p85
      %p88 = scmp.ne.s32.totalorder %s73, %s87
      %p89 = scmp.eq.s32.totalorder %s21, 0
      %p90 = por %p88, %p89
      %s92 = sadd.s32 %s91, 1
      %p95 = scmp.eq.s32.totalorder %s15, 1
      %p96 = scmp.ne.s32.totalorder %s91, %s93
      %p97 = scmp.eq.s32.totalorder %s15, 0
      %p98 = por %p96, %p97
      %p99 = scmp.ne.s32.totalorder %s91, %s93
      %p100 = scmp.eq.s32.totalorder %s20, 1
      %p101 = por %p99, %p100
      %p102 = scmp.ne.s32.totalorder %s93, %s94
      %p103 = scmp.eq.s32.totalorder %s20, 0
      %p104 = por %p102, %p103
      %p105 = scmp.ne.s32.totalorder %s93, %s94
      %p106 = scmp.eq.s32.totalorder %s21, 1
      %p107 = por %p105, %p106
      %p109 = scmp.ne.s32.totalorder %s94, %s108
      %p110 = scmp.eq.s32.totalorder %s21, 0
      %p111 = por %p109, %p110
      %s113 = sadd.s32 %s112, 1
      %p116 = scmp.eq.s32.totalorder %s15, 1
      %p117 = scmp.ne.s32.totalorder %s112, %s114
      %p118 = scmp.eq.s32.totalorder %s15, 0
      %p119 = por %p117, %p118
      %p120 = scmp.ne.s32.totalorder %s112, %s114
      %p121 = scmp.eq.s32.totalorder %s20, 1
      %p122 = por %p120, %p121
      %p123 = scmp.ne.s32.totalorder %s114, %s115
      %p124 = scmp.eq.s32.totalorder %s20, 0
      %p125 = por %p123, %p124
      %p126 = scmp.ne.s32.totalorder %s114, %s115
      %p127 = scmp.eq.s32.totalorder %s21, 1
      %p128 = por %p126, %p127
      %p130 = scmp.ne.s32.totalorder %s115, %s129
      %p131 = scmp.eq.s32.totalorder %s21, 0
      %p132 = por %p130, %p131
      %s134 = sadd.s32 %s133, 1
      %p137 = scmp.eq.s32.totalorder %s15, 1
      %p138 = scmp.ne.s32.totalorder %s133, %s135
      %p139 = scmp.eq.s32.totalorder %s15, 0
      %p140 = por %p138, %p139
      %p141 = scmp.ne.s32.totalorder %s133, %s135
      %p142 = scmp.eq.s32.totalorder %s20, 1
      %p143 = por %p141, %p142
      %p144 = scmp.ne.s32.totalorder %s135, %s136
      %p145 = scmp.eq.s32.totalorder %s20, 0
      %p146 = por %p144, %p145
      %p147 = scmp.ne.s32.totalorder %s135, %s136
      %p148 = scmp.eq.s32.totalorder %s21, 1
      %p149 = por %p147, %p148
      %p151 = scmp.ne.s32.totalorder %s136, %s150
      %p152 = scmp.eq.s32.totalorder %s21, 0
      %p153 = por %p151, %p152
      %s154 = ssub.s32 %s15, %s22
      %p155 = scmp.eq.s32.totalorder %s154, 0
      %s157 = sadd.s32 %s156, 1
      %s158 = scalar_select %p155, %s156, %s157
      %p161 = pneg %p155
      %p162 = scmp.eq.s32.totalorder %s15, 1
      %p163 = por %p161, %p162
      %p164 = scmp.ne.s32.totalorder %s156, %s159
      %p165 = scmp.eq.s32.totalorder %s15, 0
      %p166 = por %p164, %p165
      %p167 = scmp.ne.s32.totalorder %s156, %s159
      %p168 = scmp.eq.s32.totalorder %s20, 1
      %p169 = por %p167, %p168
      %p170 = scmp.ne.s32.totalorder %s159, %s160
      %p171 = scmp.eq.s32.totalorder %s20, 0
      %p172 = por %p170, %p171
      %p173 = scmp.ne.s32.totalorder %s159, %s160
      %p174 = scmp.eq.s32.totalorder %s21, 1
      %p175 = por %p173, %p174
      %p177 = scmp.ne.s32.totalorder %s160, %s176
      %p178 = scmp.eq.s32.totalorder %s21, 0
      %p179 = por %p177, %p178
      %p180 = scmp.le.s32.totalorder 1, %s15
      %p181 = scmp.lt.s32.totalorder %s15, 3
      %p182 = pnand %p180, %p181
      %p183 = pneg %p182
      // Predicated region
      $region9: #{tpu_custom_call.1} parent=5 // pred_check
        _
      $region10: #{tpu_custom_call.1} parent=5 // pred_check_branch
        %185 = sbr.rel (%p182) target = $region12
      $region11: #{tpu_custom_call.1} parent=5 // pred_region
        %s186 = ssub.s32 %s15, 1
        // Predicated region
        $region13: #{tpu_custom_call.1} parent=11 // pred_check
          %p187 = pneg %p62
        $region14: #{tpu_custom_call.1} parent=11 // pred_check_branch
          %189 = sbr.rel (%p187) target = $region16
        $region15: #{tpu_custom_call.1} parent=11 // pred_region
          _
        $region16: #{tpu_custom_call.1} parent=11 // pred_fallthru
          _
        // Predicated region
        $region17: #{tpu_custom_call.1} parent=11 // pred_check
          %p190 = pneg %p83
        $region18: #{tpu_custom_call.1} parent=11 // pred_check_branch
          %192 = sbr.rel (%p190) target = $region20
        $region19: #{tpu_custom_call.1} parent=11 // pred_region
          _
        $region20: #{tpu_custom_call.1} parent=11 // pred_fallthru
          _
        // Predicated region
        $region21: #{tpu_custom_call.1} parent=11 // pred_check
          %p193 = pneg %p104
        $region22: #{tpu_custom_call.1} parent=11 // pred_check_branch
          %195 = sbr.rel (%p193) target = $region24
        $region23: #{tpu_custom_call.1} parent=11 // pred_region
          _
        $region24: #{tpu_custom_call.1} parent=11 // pred_fallthru
          _
        // Predicated region
        $region25: #{tpu_custom_call.1} parent=11 // pred_check
          %p196 = pneg %p125
        $region26: #{tpu_custom_call.1} parent=11 // pred_check_branch
          %198 = sbr.rel (%p196) target = $region28
        $region27: #{tpu_custom_call.1} parent=11 // pred_region
          _
        $region28: #{tpu_custom_call.1} parent=11 // pred_fallthru
          _
        // Predicated region
        $region29: #{tpu_custom_call.1} parent=11 // pred_check
          %p199 = pneg %p146
        $region30: #{tpu_custom_call.1} parent=11 // pred_check_branch
          %201 = sbr.rel (%p199) target = $region32
        $region31: #{tpu_custom_call.1} parent=11 // pred_region
          _
        $region32: #{tpu_custom_call.1} parent=11 // pred_fallthru
          _
      $region12: #{tpu_custom_call.1} parent=5 // pred_fallthru
        _
      %p202 = scmp.lt.s32.totalorder %s15, 2
      // Predicated region
      $region33: #{tpu_custom_call.1} parent=5 // pred_check
        %p203 = pneg %p202
      $region34: #{tpu_custom_call.1} parent=5 // pred_check_branch
        %205 = sbr.rel (%p203) target = $region36
      $region35: #{tpu_custom_call.1} parent=5 // pred_region
        // Predicated region
        $region37: #{tpu_custom_call.1} parent=35 // pred_check
          %p206 = pneg %p35
        $region38: #{tpu_custom_call.1} parent=35 // pred_check_branch
          %208 = sbr.rel (%p206) target = $region40
        $region39: #{tpu_custom_call.1} parent=35 // pred_region
          %p209 = scmp.lt.s32.totalorder %s15, 1
          %s210 = scalar_select %p209, %s15, 1
          %s211 = smul.addr %s210, 16
          %s212 = smul.addr %s211, 8
          %s213 = scalar_lea.vmem %s0, %s212
        $region40: #{tpu_custom_call.1} parent=35 // pred_fallthru
          _
      $region36: #{tpu_custom_call.1} parent=5 // pred_fallthru
        _
      %p214 = scmp.le.s32.totalorder 1, %s15
      %p215 = scmp.lt.s32.totalorder %s15, 3
      %p216 = pnand %p214, %p215
      %p217 = pneg %p216
      // Predicated region
      $region41: #{tpu_custom_call.1} parent=5 // pred_check
        _
      $region42: #{tpu_custom_call.1} parent=5 // pred_check_branch
        %219 = sbr.rel (%p216) target = $region44
      $region43: #{tpu_custom_call.1} parent=5 // pred_region
        %s220 = ssub.s32 %s15, 1
        %p221 = scmp.lt.s32.totalorder %s20, 1
        %s222 = scalar_select %p221, %s20, 1
        %s223 = smul.addr %s222, 16
        %s224 = smul.addr %s223, 8
        %s225 = scalar_lea.vmem %s0, %s224
        %p226 = pneg %p41
        %p227 = pneg %p38
        %p228 = pneg %p62
        %p229 = pneg %p59
        %p230 = pneg %p83
        %p231 = pneg %p80
        %p232 = pneg %p104
        %p233 = pneg %p101
        %p234 = pneg %p125
        %p235 = pneg %p122
        %p236 = pneg %p146
        %p237 = pneg %p143
        %p238 = pneg %p172
        %p239 = pneg %p169
        %s240 = sand.u32 %s159, 1
        %s241 = scalar_lea.sflag [#allocation5], %s240
        %s242 = sand.u32 %s159, 1
        %s243 = smul.addr %s242, 128
        %s244 = scalar_lea.vmem [#allocation4], %s243
        %p245 = scmp.lt.s32.totalorder %s20, 1
        %s246 = scalar_select %p245, %s20, 1
        %s247 = smul.addr %s246, 16
        %s248 = smul.addr %s247, 8
        %s249 = scalar_lea.vmem %s0, %s248
        %v251 = vld [vmem:[%s249] sm:$0xff]
        %v252 = vld [vmem:[%s249 + $0x8] sm:$0xff]
        %v253 = vld [vmem:[%s249 + $0x10] sm:$0xff]
        %v254 = vld [vmem:[%s249 + $0x18] sm:$0xff]
        %v255 = vld [vmem:[%s249 + $0x20] sm:$0xff]
        %v256 = vld [vmem:[%s249 + $0x28] sm:$0xff]
        %v257 = vld [vmem:[%s249 + $0x30] sm:$0xff]
        %v258 = vld [vmem:[%s249 + $0x38] sm:$0xff]
        %v259 = vld [vmem:[%s249 + $0x40] sm:$0xff]
        %v260 = vld [vmem:[%s249 + $0x48] sm:$0xff]
        %v261 = vld [vmem:[%s249 + $0x50] sm:$0xff]
        %v262 = vld [vmem:[%s249 + $0x58] sm:$0xff]
        %v263 = vld [vmem:[%s249 + $0x60] sm:$0xff]
        %v264 = vld [vmem:[%s249 + $0x68] sm:$0xff]
        %v265 = vld [vmem:[%s249 + $0x70] sm:$0xff]
        %v266 = vld [vmem:[%s249 + $0x78] sm:$0xff]
        %v267 = vld [vmem:[%s3] sm:$0xff]
        %v268 = vld [vmem:[%s3 + $0x8] sm:$0xff]
        %v269 = vld [vmem:[%s3 + $0x10] sm:$0xff]
        %v270 = vld [vmem:[%s3 + $0x18] sm:$0xff]
        %v271 = vld [vmem:[%s3 + $0x20] sm:$0xff]
        %v272 = vld [vmem:[%s3 + $0x28] sm:$0xff]
        %v273 = vld [vmem:[%s3 + $0x30] sm:$0xff]
        %v274 = vld [vmem:[%s3 + $0x38] sm:$0xff]
        %v275 = vld [vmem:[%s3 + $0x40] sm:$0xff]
        %v276 = vld [vmem:[%s3 + $0x48] sm:$0xff]
        %v277 = vld [vmem:[%s3 + $0x50] sm:$0xff]
        %v278 = vld [vmem:[%s3 + $0x58] sm:$0xff]
        %v279 = vld [vmem:[%s3 + $0x60] sm:$0xff]
        %v280 = vld [vmem:[%s3 + $0x68] sm:$0xff]
        %v281 = vld [vmem:[%s3 + $0x70] sm:$0xff]
        %v282 = vld [vmem:[%s3 + $0x78] sm:$0xff]
        %v283 = vld [vmem:[%s3 + $0x80] sm:$0xff]
        %v284 = vld [vmem:[%s3 + $0x88] sm:$0xff]
        %v285 = vld [vmem:[%s3 + $0x90] sm:$0xff]
        %v286 = vld [vmem:[%s3 + $0x98] sm:$0xff]
        %v287 = vld [vmem:[%s3 + $0xa0] sm:$0xff]
        %v288 = vld [vmem:[%s3 + $0xa8] sm:$0xff]
        %v289 = vld [vmem:[%s3 + $0xb0] sm:$0xff]
        %v290 = vld [vmem:[%s3 + $0xb8] sm:$0xff]
        %v291 = vadd.f32 %v251, %v252
        %292 = vadd.xlane.f32.xlu0 %v291
        %v293 = vpop.xlane.xlu0 %292
        %v294 = vadd.f32 %v253, %v254
        %295 = vadd.xlane.f32.xlu0 %v294
        %v296 = vpop.xlane.xlu0 %295
        %v297 = vadd.f32 %v255, %v256
        %298 = vadd.xlane.f32.xlu0 %v297
        %v299 = vpop.xlane.xlu0 %298
        %v300 = vadd.f32 %v257, %v258
        %301 = vadd.xlane.f32.xlu0 %v300
        %v302 = vpop.xlane.xlu0 %301
        %v303 = vadd.f32 %v259, %v260
        %304 = vadd.xlane.f32.xlu0 %v303
        %v305 = vpop.xlane.xlu0 %304
        %v306 = vadd.f32 %v261, %v262
        %307 = vadd.xlane.f32.xlu0 %v306
        %v308 = vpop.xlane.xlu0 %307
        %v309 = vadd.f32 %v263, %v264
        %310 = vadd.xlane.f32.xlu0 %v309
        %v311 = vpop.xlane.xlu0 %310
        %v312 = vadd.f32 %v265, %v266
        %313 = vadd.xlane.f32.xlu0 %v312
        %v314 = vpop.xlane.xlu0 %313
        %v315 = vld [vmem:[%s1] sm:$0xff]
        %v316 = vld [vmem:[%s1 + $0x8] sm:$0xff]
        %v317 = vld [vmem:[%s1 + $0x10] sm:$0xff]
        %v318 = vld [vmem:[%s1 + $0x18] sm:$0xff]
        %vm319 = vcmask 523264
        %v321 = vsel %vm319, %v315, 0
        %v324 = vsel %vm319, %v316, 0
        %v327 = vsel %vm319, %v317, 0
        %v330 = vsel %vm319, %v318, 0
        %332 = vmatpush.msra.mxu0 0.0
        %333 = vmatpush.msra.mxu0 0.0
        %334 = vmatpush.msra.mxu0 0.0
        %335 = vmatpush.msra.mxu0 0.0
        %336 = vmatpush.msra.mxu0 0.0
        %337 = vmatpush.msra.mxu0 0.0
        %338 = vmatpush.msra.mxu0 0.0
        %339 = vmatpush.msra.mxu0 0.0
        %340 = vmatpush.msra.mxu0 %v314
        %341 = vmatpush.msra.mxu0 %v311
        %342 = vmatpush.msra.mxu0 %v308
        %343 = vmatpush.msra.mxu0 %v305
        %344 = vmatpush.msra.mxu0 %v302
        %345 = vmatpush.msra.mxu0 %v299
        %346 = vmatpush.msra.mxu0 %v296
        %347 = vmatpush.msra.mxu0 %v293
        %348 = vmatmul.f32.gmra.mxu0 %v321
        %v349 = vpop.f32.mrf.mxu0
        %v350 = vadd.f32 0.0, %v349
        %351 = vmatmul.f32.gmra.mxu0 %v324
        %v352 = vpop.f32.mrf.mxu0
        %v353 = vadd.f32 0.0, %v352
        %354 = vmatmul.f32.gmra.mxu0 %v327
        %v355 = vpop.f32.mrf.mxu0
        %v356 = vadd.f32 0.0, %v355
        %357 = vmatmul.f32.gmra.mxu0 %v330
        %v358 = vpop.f32.mrf.mxu0
        %v359 = vadd.f32 0.0, %v358
        %360 = vdwg.mxu0
        %v361 = vmul.f32 %v350, 0.001953125
        %v362 = vmul.f32 %v353, 0.001953125
        %v363 = vmul.f32 %v356, 0.001953125
        %v364 = vmul.f32 %v359, 0.001953125
        %v365 = vld [vmem:[%s2] sm:$0xff]
        %v366 = vld [vmem:[%s2 + $0x8] sm:$0xff]
        %v367 = vld [vmem:[%s2 + $0x10] sm:$0xff]
        %v368 = vld [vmem:[%s2 + $0x18] sm:$0xff]
        %v369 = vld [vmem:[%s2 + $0x20] sm:$0xff]
        %v370 = vld [vmem:[%s2 + $0x28] sm:$0xff]
        %v371 = vld [vmem:[%s2 + $0x30] sm:$0xff]
        %v372 = vld [vmem:[%s2 + $0x38] sm:$0xff]
        %vm373 = vcmask 261120
        %v375 = vsel %vm373, %v365, 0
        %v378 = vsel %vm373, %v366, 0
        %v381 = vsel %vm373, %v367, 0
        %v384 = vsel %vm373, %v368, 0
        %v387 = vsel %vm373, %v369, 0
        %v390 = vsel %vm373, %v370, 0
        %v393 = vsel %vm373, %v371, 0
        %v396 = vsel %vm373, %v372, 0
        %398 = vmatpush.msra.mxu0 0.0
        %399 = vmatpush.msra.mxu0 0.0
        %400 = vmatpush.msra.mxu0 0.0
        %401 = vmatpush.msra.mxu0 0.0
        %402 = vmatpush.msra.mxu0 0.0
        %403 = vmatpush.msra.mxu0 0.0
        %404 = vmatpush.msra.mxu0 0.0
        %405 = vmatpush.msra.mxu0 0.0
        %406 = vmatpush.msra.mxu0 0.0
        %407 = vmatpush.msra.mxu0 0.0
        %408 = vmatpush.msra.mxu0 0.0
        %409 = vmatpush.msra.mxu0 0.0
        %410 = vmatpush.msra.mxu0 %v364
        %411 = vmatpush.msra.mxu0 %v363
        %412 = vmatpush.msra.mxu0 %v362
        %413 = vmatpush.msra.mxu0 %v361
        %414 = vmatmul.f32.gmra.mxu0 %v375
        %v415 = vpop.f32.mrf.mxu0
        %v416 = vadd.f32 0.0, %v415
        %417 = vmatmul.f32.gmra.mxu0 %v378
        %v418 = vpop.f32.mrf.mxu0
        %v419 = vadd.f32 0.0, %v418
        %420 = vmatmul.f32.gmra.mxu0 %v381
        %v421 = vpop.f32.mrf.mxu0
        %v422 = vadd.f32 0.0, %v421
        %423 = vmatmul.f32.gmra.mxu0 %v384
        %v424 = vpop.f32.mrf.mxu0
        %v425 = vadd.f32 0.0, %v424
        %426 = vmatmul.f32.gmra.mxu0 %v387
        %v427 = vpop.f32.mrf.mxu0
        %v428 = vadd.f32 0.0, %v427
        %429 = vmatmul.f32.gmra.mxu0 %v390
        %v430 = vpop.f32.mrf.mxu0
        %v431 = vadd.f32 0.0, %v430
        %432 = vmatmul.f32.gmra.mxu0 %v393
        %v433 = vpop.f32.mrf.mxu0
        %v434 = vadd.f32 0.0, %v433
        %435 = vmatmul.f32.gmra.mxu0 %v396
        %v436 = vpop.f32.mrf.mxu0
        %v437 = vadd.f32 0.0, %v436
        %438 = vdwg.mxu0
        %440 = vset.pattern.permute.xlu0 0
        %441 = vperm.xlu0 %440, %v416
        %v442 = vpop.permute.xlu0 %441
        %445 = vset.pattern.permute.xlu0 0
        %446 = vperm.xlu0 %445, %v419
        %v447 = vpop.permute.xlu0 %446
        %450 = vset.pattern.permute.xlu0 0
        %451 = vperm.xlu0 %450, %v422
        %v452 = vpop.permute.xlu0 %451
        %455 = vset.pattern.permute.xlu0 0
        %456 = vperm.xlu0 %455, %v425
        %v457 = vpop.permute.xlu0 %456
        %460 = vset.pattern.permute.xlu0 0
        %461 = vperm.xlu0 %460, %v428
        %v462 = vpop.permute.xlu0 %461
        %465 = vset.pattern.permute.xlu0 0
        %466 = vperm.xlu0 %465, %v431
        %v467 = vpop.permute.xlu0 %466
        %470 = vset.pattern.permute.xlu0 0
        %471 = vperm.xlu0 %470, %v434
        %v472 = vpop.permute.xlu0 %471
        %475 = vset.pattern.permute.xlu0 0
        %476 = vperm.xlu0 %475, %v437
        %v477 = vpop.permute.xlu0 %476
        %v479 = vsub.f32 %v251, %v442
        %v480 = vsub.f32 %v252, %v442
        %v481 = vsub.f32 %v253, %v447
        %v482 = vsub.f32 %v254, %v447
        %v483 = vsub.f32 %v255, %v452
        %v484 = vsub.f32 %v256, %v452
        %v485 = vsub.f32 %v257, %v457
        %v486 = vsub.f32 %v258, %v457
        %v487 = vsub.f32 %v259, %v462
        %v488 = vsub.f32 %v260, %v462
        %v489 = vsub.f32 %v261, %v467
        %v490 = vsub.f32 %v262, %v467
        %v491 = vsub.f32 %v263, %v472
        %v492 = vsub.f32 %v264, %v472
        %v493 = vsub.f32 %v265, %v477
        %v494 = vsub.f32 %v266, %v477
        %v495 = vmul.f32 %v479, %v479
        %v496 = vmul.f32 %v480, %v480
        %v497 = vmul.f32 %v481, %v481
        %v498 = vmul.f32 %v482, %v482
        %v499 = vmul.f32 %v483, %v483
        %v500 = vmul.f32 %v484, %v484
        %v501 = vmul.f32 %v485, %v485
        %v502 = vmul.f32 %v486, %v486
        %v503 = vmul.f32 %v487, %v487
        %v504 = vmul.f32 %v488, %v488
        %v505 = vmul.f32 %v489, %v489
        %v506 = vmul.f32 %v490, %v490
        %v507 = vmul.f32 %v491, %v491
        %v508 = vmul.f32 %v492, %v492
        %v509 = vmul.f32 %v493, %v493
        %v510 = vmul.f32 %v494, %v494
        %v511 = vadd.f32 %v495, %v496
        %512 = vadd.xlane.f32.xlu0 %v511
        %v513 = vpop.xlane.xlu0 %512
        %v514 = vadd.f32 %v497, %v498
        %515 = vadd.xlane.f32.xlu0 %v514
        %v516 = vpop.xlane.xlu0 %515
        %v517 = vadd.f32 %v499, %v500
        %518 = vadd.xlane.f32.xlu0 %v517
        %v519 = vpop.xlane.xlu0 %518
        %v520 = vadd.f32 %v501, %v502
        %521 = vadd.xlane.f32.xlu0 %v520
        %v522 = vpop.xlane.xlu0 %521
        %v523 = vadd.f32 %v503, %v504
        %524 = vadd.xlane.f32.xlu0 %v523
        %v525 = vpop.xlane.xlu0 %524
        %v526 = vadd.f32 %v505, %v506
        %527 = vadd.xlane.f32.xlu0 %v526
        %v528 = vpop.xlane.xlu0 %527
        %v529 = vadd.f32 %v507, %v508
        %530 = vadd.xlane.f32.xlu0 %v529
        %v531 = vpop.xlane.xlu0 %530
        %v532 = vadd.f32 %v509, %v510
        %533 = vadd.xlane.f32.xlu0 %v532
        %v534 = vpop.xlane.xlu0 %533
        %535 = vmatpush.msra.mxu0 0.0
        %536 = vmatpush.msra.mxu0 0.0
        %537 = vmatpush.msra.mxu0 0.0
        %538 = vmatpush.msra.mxu0 0.0
        %539 = vmatpush.msra.mxu0 0.0
        %540 = vmatpush.msra.mxu0 0.0
        %541 = vmatpush.msra.mxu0 0.0
        %542 = vmatpush.msra.mxu0 0.0
        %543 = vmatpush.msra.mxu0 %v534
        %544 = vmatpush.msra.mxu0 %v531
        %545 = vmatpush.msra.mxu0 %v528
        %546 = vmatpush.msra.mxu0 %v525
        %547 = vmatpush.msra.mxu0 %v522
        %548 = vmatpush.msra.mxu0 %v519
        %549 = vmatpush.msra.mxu0 %v516
        %550 = vmatpush.msra.mxu0 %v513
        %551 = vmatmul.f32.gmra.mxu0 %v321
        %v552 = vpop.f32.mrf.mxu0
        %v553 = vadd.f32 0.0, %v552
        %554 = vmatmul.f32.gmra.mxu0 %v324
        %v555 = vpop.f32.mrf.mxu0
        %v556 = vadd.f32 0.0, %v555
        %557 = vmatmul.f32.gmra.mxu0 %v327
        %v558 = vpop.f32.mrf.mxu0
        %v559 = vadd.f32 0.0, %v558
        %560 = vmatmul.f32.gmra.mxu0 %v330
        %v561 = vpop.f32.mrf.mxu0
        %v562 = vadd.f32 0.0, %v561
        %563 = vdwg.mxu0
        %v564 = vmul.f32 %v553, 0.001953125
        %v565 = vmul.f32 %v556, 0.001953125
        %v566 = vmul.f32 %v559, 0.001953125
        %v567 = vmul.f32 %v562, 0.001953125
        %v568 = vadd.f32 %v564, 1e-05
        %v569 = vadd.f32 %v565, 1e-05
        %v570 = vadd.f32 %v566, 1e-05
        %v571 = vadd.f32 %v567, 1e-05
        %v572 = vrsqrt.pop %v568
        %v573 = vmul.f32 %v572, %v568
        %v574 = vmul.f32 %v573, %v572
        %v575 = vmul.f32 0.5, %v574
        %v576 = vsub.f32 1.5, %v575
        %v577 = vmul.f32 %v572, %v576
        %vm578 = vweird.f32 %v568
        %vm579 = vweird.f32 %v572
        %vm580 = vmor %vm578, %vm579
        %v581 = vsel %vm580, %v572, %v577
        %v582 = vrsqrt.pop %v569
        %v583 = vmul.f32 %v582, %v569
        %v584 = vmul.f32 %v583, %v582
        %v585 = vmul.f32 0.5, %v584
        %v586 = vsub.f32 1.5, %v585
        %v587 = vmul.f32 %v582, %v586
        %vm588 = vweird.f32 %v569
        %vm589 = vweird.f32 %v582
        %vm590 = vmor %vm588, %vm589
        %v591 = vsel %vm590, %v582, %v587
        %v592 = vrsqrt.pop %v570
        %v593 = vmul.f32 %v592, %v570
        %v594 = vmul.f32 %v593, %v592
        %v595 = vmul.f32 0.5, %v594
        %v596 = vsub.f32 1.5, %v595
        %v597 = vmul.f32 %v592, %v596
        %vm598 = vweird.f32 %v570
        %vm599 = vweird.f32 %v592
        %vm600 = vmor %vm598, %vm599
        %v601 = vsel %vm600, %v592, %v597
        %v602 = vrsqrt.pop %v571
        %v603 = vmul.f32 %v602, %v571
        %v604 = vmul.f32 %v603, %v602
        %v605 = vmul.f32 0.5, %v604
        %v606 = vsub.f32 1.5, %v605
        %v607 = vmul.f32 %v602, %v606
        %vm608 = vweird.f32 %v571
        %vm609 = vweird.f32 %v602
        %vm610 = vmor %vm608, %vm609
        %v611 = vsel %vm610, %v602, %v607
        %612 = vmatpush.msra.mxu0 0.0
        %613 = vmatpush.msra.mxu0 0.0
        %614 = vmatpush.msra.mxu0 0.0
        %615 = vmatpush.msra.mxu0 0.0
        %616 = vmatpush.msra.mxu0 0.0
        %617 = vmatpush.msra.mxu0 0.0
        %618 = vmatpush.msra.mxu0 0.0
        %619 = vmatpush.msra.mxu0 0.0
        %620 = vmatpush.msra.mxu0 0.0
        %621 = vmatpush.msra.mxu0 0.0
        %622 = vmatpush.msra.mxu0 0.0
        %623 = vmatpush.msra.mxu0 0.0
        %624 = vmatpush.msra.mxu0 %v611
        %625 = vmatpush.msra.mxu0 %v601
        %626 = vmatpush.msra.mxu0 %v591
        %627 = vmatpush.msra.mxu0 %v581
        %628 = vmatmul.f32.gmra.mxu0 %v375
        %v629 = vpop.f32.mrf.mxu0
        %v630 = vadd.f32 0.0, %v629
        %631 = vmatmul.f32.gmra.mxu0 %v378
        %v632 = vpop.f32.mrf.mxu0
        %v633 = vadd.f32 0.0, %v632
        %634 = vmatmul.f32.gmra.mxu0 %v381
        %v635 = vpop.f32.mrf.mxu0
        %v636 = vadd.f32 0.0, %v635
        %637 = vmatmul.f32.gmra.mxu0 %v384
        %v638 = vpop.f32.mrf.mxu0
        %v639 = vadd.f32 0.0, %v638
        %640 = vmatmul.f32.gmra.mxu0 %v387
        %v641 = vpop.f32.mrf.mxu0
        %v642 = vadd.f32 0.0, %v641
        %643 = vmatmul.f32.gmra.mxu0 %v390
        %v644 = vpop.f32.mrf.mxu0
        %v645 = vadd.f32 0.0, %v644
        %646 = vmatmul.f32.gmra.mxu0 %v393
        %v647 = vpop.f32.mrf.mxu0
        %v648 = vadd.f32 0.0, %v647
        %649 = vmatmul.f32.gmra.mxu0 %v396
        %v650 = vpop.f32.mrf.mxu0
        %v651 = vadd.f32 0.0, %v650
        %652 = vdwg.mxu0
        %661 = vrot.lane.b32.xlu0 %v267, 127
        %v662 = vpop.permute.xlu0 %661
        %663 = vrot.lane.b32.xlu0 %v268, 127
        %v664 = vpop.permute.xlu0 %663
        %665 = vrot.lane.b32.xlu0 %v269, 127
        %v666 = vpop.permute.xlu0 %665
        %667 = vrot.lane.b32.xlu0 %v270, 127
        %v668 = vpop.permute.xlu0 %667
        %669 = vrot.lane.b32.xlu0 %v271, 127
        %v670 = vpop.permute.xlu0 %669
        %671 = vrot.lane.b32.xlu0 %v272, 127
        %v672 = vpop.permute.xlu0 %671
        %673 = vrot.lane.b32.xlu0 %v273, 127
        %v674 = vpop.permute.xlu0 %673
        %675 = vrot.lane.b32.xlu0 %v274, 127
        %v676 = vpop.permute.xlu0 %675
        %v685 = vmul.f32 %v630, %v662
        %v686 = vmul.f32 %v633, %v664
        %v687 = vmul.f32 %v636, %v666
        %v688 = vmul.f32 %v639, %v668
        %v689 = vmul.f32 %v642, %v670
        %v690 = vmul.f32 %v645, %v672
        %v691 = vmul.f32 %v648, %v674
        %v692 = vmul.f32 %v651, %v676
        %694 = vset.pattern.permute.xlu0 0
        %695 = vperm.xlu0 %694, %v685
        %v696 = vpop.permute.xlu0 %695
        %699 = vset.pattern.permute.xlu0 0
        %700 = vperm.xlu0 %699, %v686
        %v701 = vpop.permute.xlu0 %700
        %704 = vset.pattern.permute.xlu0 0
        %705 = vperm.xlu0 %704, %v687
        %v706 = vpop.permute.xlu0 %705
        %709 = vset.pattern.permute.xlu0 0
        %710 = vperm.xlu0 %709, %v688
        %v711 = vpop.permute.xlu0 %710
        %714 = vset.pattern.permute.xlu0 0
        %715 = vperm.xlu0 %714, %v689
        %v716 = vpop.permute.xlu0 %715
        %719 = vset.pattern.permute.xlu0 0
        %720 = vperm.xlu0 %719, %v690
        %v721 = vpop.permute.xlu0 %720
        %724 = vset.pattern.permute.xlu0 0
        %725 = vperm.xlu0 %724, %v691
        %v726 = vpop.permute.xlu0 %725
        %729 = vset.pattern.permute.xlu0 0
        %730 = vperm.xlu0 %729, %v692
        %v731 = vpop.permute.xlu0 %730
        %v733 = vmul.f32 %v479, %v696
        %v734 = vmul.f32 %v480, %v696
        %v735 = vmul.f32 %v481, %v701
        %v736 = vmul.f32 %v482, %v701
        %v737 = vmul.f32 %v483, %v706
        %v738 = vmul.f32 %v484, %v706
        %v739 = vmul.f32 %v485, %v711
        %v740 = vmul.f32 %v486, %v711
        %v741 = vmul.f32 %v487, %v716
        %v742 = vmul.f32 %v488, %v716
        %v743 = vmul.f32 %v489, %v721
        %v744 = vmul.f32 %v490, %v721
        %v745 = vmul.f32 %v491, %v726
        %v746 = vmul.f32 %v492, %v726
        %v747 = vmul.f32 %v493, %v731
        %v748 = vmul.f32 %v494, %v731
        %749 = vset.pattern.permute.xlu0 2
        %750 = vperm.xlu0 %749, %v267
        %v751 = vpop.permute.xlu0 %750
        %753 = vset.pattern.permute.xlu0 2
        %754 = vperm.xlu0 %753, %v268
        %v755 = vpop.permute.xlu0 %754
        %757 = vset.pattern.permute.xlu0 2
        %758 = vperm.xlu0 %757, %v269
        %v759 = vpop.permute.xlu0 %758
        %761 = vset.pattern.permute.xlu0 2
        %762 = vperm.xlu0 %761, %v270
        %v763 = vpop.permute.xlu0 %762
        %765 = vset.pattern.permute.xlu0 2
        %766 = vperm.xlu0 %765, %v271
        %v767 = vpop.permute.xlu0 %766
        %769 = vset.pattern.permute.xlu0 2
        %770 = vperm.xlu0 %769, %v272
        %v771 = vpop.permute.xlu0 %770
        %773 = vset.pattern.permute.xlu0 2
        %774 = vperm.xlu0 %773, %v273
        %v775 = vpop.permute.xlu0 %774
        %777 = vset.pattern.permute.xlu0 2
        %778 = vperm.xlu0 %777, %v274
        %v779 = vpop.permute.xlu0 %778
        %v781 = vadd.f32 %v733, %v751
        %v782 = vadd.f32 %v734, %v751
        %v783 = vadd.f32 %v735, %v755
        %v784 = vadd.f32 %v736, %v755
        %v785 = vadd.f32 %v737, %v759
        %v786 = vadd.f32 %v738, %v759
        %v787 = vadd.f32 %v739, %v763
        %v788 = vadd.f32 %v740, %v763
        %v789 = vadd.f32 %v741, %v767
        %v790 = vadd.f32 %v742, %v767
        %v791 = vadd.f32 %v743, %v771
        %v792 = vadd.f32 %v744, %v771
        %v793 = vadd.f32 %v745, %v775
        %v794 = vadd.f32 %v746, %v775
        %v795 = vadd.f32 %v747, %v779
        %v796 = vadd.f32 %v748, %v779
        %v797 = vpack.c.bf16 %v783, %v781
        %v798 = vpack.c.bf16 %v784, %v782
        %v799 = vpack.c.bf16 %v787, %v785
        %v800 = vpack.c.bf16 %v788, %v786
        %v801 = vpack.c.bf16 %v791, %v789
        %v802 = vpack.c.bf16 %v792, %v790
        %v803 = vpack.c.bf16 %v795, %v793
        %v804 = vpack.c.bf16 %v796, %v794
        %v805 = vld [vmem:[%s4] sm:$0xf]
        %v806 = vld [vmem:[%s4 + $0x4] sm:$0xf]
        %v807 = vld [vmem:[%s4 + $0x8] sm:$0xf]
        %v808 = vld [vmem:[%s4 + $0xc] sm:$0xf]
        %v809 = vld [vmem:[%s4 + $0x10] sm:$0xf]
        %v810 = vld [vmem:[%s4 + $0x14] sm:$0xf]
        %v811 = vld [vmem:[%s4 + $0x18] sm:$0xf]
        %v812 = vld [vmem:[%s4 + $0x1c] sm:$0xf]
        %v813 = vld [vmem:[%s4 + $0x20] sm:$0xf]
        %v814 = vld [vmem:[%s4 + $0x24] sm:$0xf]
        %v815 = vld [vmem:[%s4 + $0x28] sm:$0xf]
        %v816 = vld [vmem:[%s4 + $0x2c] sm:$0xf]
        %v817 = vld [vmem:[%s4 + $0x30] sm:$0xf]
        %v818 = vld [vmem:[%s4 + $0x34] sm:$0xf]
        %v819 = vld [vmem:[%s4 + $0x38] sm:$0xf]
        %v820 = vld [vmem:[%s4 + $0x3c] sm:$0xf]
        %v821 = vld [vmem:[%s4 + $0x40] sm:$0xf]
        %v822 = vld [vmem:[%s4 + $0x44] sm:$0xf]
        %v823 = vld [vmem:[%s4 + $0x48] sm:$0xf]
        %v824 = vld [vmem:[%s4 + $0x4c] sm:$0xf]
        %v825 = vld [vmem:[%s4 + $0x50] sm:$0xf]
        %v826 = vld [vmem:[%s4 + $0x54] sm:$0xf]
        %v827 = vld [vmem:[%s4 + $0x58] sm:$0xf]
        %v828 = vld [vmem:[%s4 + $0x5c] sm:$0xf]
        %829 = vset.pattern.permute.xlu0 0
        %830 = vperm.xlu0 %829, %v267
        %v831 = vpop.permute.xlu0 %830
        %833 = vset.pattern.permute.xlu0 0
        %834 = vperm.xlu0 %833, %v268
        %v835 = vpop.permute.xlu0 %834
        %837 = vset.pattern.permute.xlu0 0
        %838 = vperm.xlu0 %837, %v269
        %v839 = vpop.permute.xlu0 %838
        %841 = vset.pattern.permute.xlu0 0
        %842 = vperm.xlu0 %841, %v270
        %v843 = vpop.permute.xlu0 %842
        %845 = vset.pattern.permute.xlu0 0
        %846 = vperm.xlu0 %845, %v271
        %v847 = vpop.permute.xlu0 %846
        %849 = vset.pattern.permute.xlu0 0
        %850 = vperm.xlu0 %849, %v272
        %v851 = vpop.permute.xlu0 %850
        %853 = vset.pattern.permute.xlu0 0
        %854 = vperm.xlu0 %853, %v273
        %v855 = vpop.permute.xlu0 %854
        %857 = vset.pattern.permute.xlu0 0
        %858 = vperm.xlu0 %857, %v274
        %v859 = vpop.permute.xlu0 %858
        %862 = vset.pattern.permute.xlu0 0
        %863 = vperm.xlu0 %862, %v275
        %v864 = vpop.permute.xlu0 %863
        %867 = vset.pattern.permute.xlu0 0
        %868 = vperm.xlu0 %867, %v276
        %v869 = vpop.permute.xlu0 %868
        %872 = vset.pattern.permute.xlu0 0
        %873 = vperm.xlu0 %872, %v277
        %v874 = vpop.permute.xlu0 %873
        %877 = vset.pattern.permute.xlu0 0
        %878 = vperm.xlu0 %877, %v278
        %v879 = vpop.permute.xlu0 %878
        %882 = vset.pattern.permute.xlu0 0
        %883 = vperm.xlu0 %882, %v279
        %v884 = vpop.permute.xlu0 %883
        %887 = vset.pattern.permute.xlu0 0
        %888 = vperm.xlu0 %887, %v280
        %v889 = vpop.permute.xlu0 %888
        %892 = vset.pattern.permute.xlu0 0
        %893 = vperm.xlu0 %892, %v281
        %v894 = vpop.permute.xlu0 %893
        %897 = vset.pattern.permute.xlu0 0
        %898 = vperm.xlu0 %897, %v282
        %v899 = vpop.permute.xlu0 %898
        %902 = vset.pattern.permute.xlu0 0
        %903 = vperm.xlu0 %902, %v283
        %v904 = vpop.permute.xlu0 %903
        %907 = vset.pattern.permute.xlu0 0
        %908 = vperm.xlu0 %907, %v284
        %v909 = vpop.permute.xlu0 %908
        %912 = vset.pattern.permute.xlu0 0
        %913 = vperm.xlu0 %912, %v285
        %v914 = vpop.permute.xlu0 %913
        %917 = vset.pattern.permute.xlu0 0
        %918 = vperm.xlu0 %917, %v286
        %v919 = vpop.permute.xlu0 %918
        %922 = vset.pattern.permute.xlu0 0
        %923 = vperm.xlu0 %922, %v287
        %v924 = vpop.permute.xlu0 %923
        %927 = vset.pattern.permute.xlu0 0
        %928 = vperm.xlu0 %927, %v288
        %v929 = vpop.permute.xlu0 %928
        %932 = vset.pattern.permute.xlu0 0
        %933 = vperm.xlu0 %932, %v289
        %v934 = vpop.permute.xlu0 %933
        %937 = vset.pattern.permute.xlu0 0
        %938 = vperm.xlu0 %937, %v290
        %v939 = vpop.permute.xlu0 %938
        %v965 = vunpack.c.l.b16 %v805
        %v966 = vunpack.c.l.b16 %v806
        %v967 = vunpack.c.l.b16 %v807
        %v968 = vunpack.c.l.b16 %v808
        %v969 = vunpack.c.l.b16 %v809
        %v970 = vunpack.c.l.b16 %v810
        %v971 = vunpack.c.l.b16 %v811
        %v972 = vunpack.c.l.b16 %v812
        %v973 = vunpack.c.l.b16 %v813
        %v974 = vunpack.c.l.b16 %v814
        %v975 = vunpack.c.l.b16 %v815
        %v976 = vunpack.c.l.b16 %v816
        %v977 = vunpack.c.l.b16 %v817
        %v978 = vunpack.c.l.b16 %v818
        %v979 = vunpack.c.l.b16 %v819
        %v980 = vunpack.c.l.b16 %v820
        %v981 = vunpack.c.l.b16 %v821
        %v982 = vunpack.c.l.b16 %v822
        %v983 = vunpack.c.l.b16 %v823
        %v984 = vunpack.c.l.b16 %v824
        %v985 = vunpack.c.l.b16 %v825
        %v986 = vunpack.c.l.b16 %v826
        %v987 = vunpack.c.l.b16 %v827
        %v988 = vunpack.c.l.b16 %v828
        %v989 = vpack.c.b16 %v966, %v965
        %v990 = vpack.c.b16 %v968, %v967
        %v991 = vpack.c.b16 %v970, %v969
        %v992 = vpack.c.b16 %v972, %v971
        %v993 = vpack.c.b16 %v974, %v973
        %v994 = vpack.c.b16 %v976, %v975
        %v995 = vpack.c.b16 %v978, %v977
        %v996 = vpack.c.b16 %v980, %v979
        %v997 = vpack.c.b16 %v982, %v981
        %v998 = vpack.c.b16 %v984, %v983
        %v999 = vpack.c.b16 %v986, %v985
        %v1000 = vpack.c.b16 %v988, %v987
        %v1002 = vsel %vm319, %v989, 0
        %v1005 = vsel %vm319, %v990, 0
        %v1008 = vsel %vm319, %v991, 0
        %v1011 = vsel %vm319, %v992, 0
        %v1014 = vsel %vm319, %v993, 0
        %v1017 = vsel %vm319, %v994, 0
        %v1020 = vsel %vm319, %v995, 0
        %v1023 = vsel %vm319, %v996, 0
        %v1026 = vsel %vm319, %v997, 0
        %v1029 = vsel %vm319, %v998, 0
        %v1032 = vsel %vm319, %v999, 0
        %v1035 = vsel %vm319, %v1000, 0
        %1037 = vmatpush.bf16.msra.mxu0 0
        %1038 = vmatpush.bf16.msra.mxu0 0
        %1039 = vmatpush.bf16.msra.mxu0 0
        %1040 = vmatpush.bf16.msra.mxu0 0
        %1041 = vmatpush.bf16.msra.mxu0 %v803
        %1042 = vmatpush.bf16.msra.mxu0 %v801
        %1043 = vmatpush.bf16.msra.mxu0 %v799
        %1044 = vmatpush.bf16.msra.mxu0 %v797
        %1045 = vmatmul.bf16.gmra.mxu0 %v1002
        %v1046 = vpop.f32.mrf.mxu0
        %v1047 = vadd.f32 %v831, %v1046
        %v1048 = vpop.f32.mrf.mxu0
        %v1049 = vadd.f32 %v835, %v1048
        %1050 = vmatmul.bf16.gmra.mxu0 %v1005
        %v1051 = vpop.f32.mrf.mxu0
        %v1052 = vadd.f32 %v839, %v1051
        %v1053 = vpop.f32.mrf.mxu0
        %v1054 = vadd.f32 %v843, %v1053
        %1055 = vmatmul.bf16.gmra.mxu0 %v1008
        %v1056 = vpop.f32.mrf.mxu0
        %v1057 = vadd.f32 %v847, %v1056
        %v1058 = vpop.f32.mrf.mxu0
        %v1059 = vadd.f32 %v851, %v1058
        %1060 = vmatmul.bf16.gmra.mxu0 %v1011
        %v1061 = vpop.f32.mrf.mxu0
        %v1062 = vadd.f32 %v855, %v1061
        %v1063 = vpop.f32.mrf.mxu0
        %v1064 = vadd.f32 %v859, %v1063
        %1065 = vmatmul.bf16.gmra.mxu0 %v1014
        %v1066 = vpop.f32.mrf.mxu0
        %v1067 = vadd.f32 %v864, %v1066
        %v1068 = vpop.f32.mrf.mxu0
        %v1069 = vadd.f32 %v869, %v1068
        %1070 = vmatmul.bf16.gmra.mxu0 %v1017
        %v1071 = vpop.f32.mrf.mxu0
        %v1072 = vadd.f32 %v874, %v1071
        %v1073 = vpop.f32.mrf.mxu0
        %v1074 = vadd.f32 %v879, %v1073
        %1075 = vmatmul.bf16.gmra.mxu0 %v1020
        %v1076 = vpop.f32.mrf.mxu0
        %v1077 = vadd.f32 %v884, %v1076
        %v1078 = vpop.f32.mrf.mxu0
        %v1079 = vadd.f32 %v889, %v1078
        %1080 = vmatmul.bf16.gmra.mxu0 %v1023
        %v1081 = vpop.f32.mrf.mxu0
        %v1082 = vadd.f32 %v894, %v1081
        %v1083 = vpop.f32.mrf.mxu0
        %v1084 = vadd.f32 %v899, %v1083
        %1085 = vmatmul.bf16.gmra.mxu0 %v1026
        %v1086 = vpop.f32.mrf.mxu0
        %v1087 = vadd.f32 %v904, %v1086
        %v1088 = vpop.f32.mrf.mxu0
        %v1089 = vadd.f32 %v909, %v1088
        %1090 = vmatmul.bf16.gmra.mxu0 %v1029
        %v1091 = vpop.f32.mrf.mxu0
        %v1092 = vadd.f32 %v914, %v1091
        %v1093 = vpop.f32.mrf.mxu0
        %v1094 = vadd.f32 %v919, %v1093
        %1095 = vmatmul.bf16.gmra.mxu0 %v1032
        %v1096 = vpop.f32.mrf.mxu0
        %v1097 = vadd.f32 %v924, %v1096
        %v1098 = vpop.f32.mrf.mxu0
        %v1099 = vadd.f32 %v929, %v1098
        %1100 = vmatmul.bf16.gmra.mxu0 %v1035
        %v1101 = vpop.f32.mrf.mxu0
        %v1102 = vadd.f32 %v934, %v1101
        %v1103 = vpop.f32.mrf.mxu0
        %v1104 = vadd.f32 %v939, %v1103
        %1105 = vdwg.mxu0
        %1106 = vmatpush.bf16.msra.mxu0 0
        %1107 = vmatpush.bf16.msra.mxu0 0
        %1108 = vmatpush.bf16.msra.mxu0 0
        %1109 = vmatpush.bf16.msra.mxu0 0
        %1110 = vmatpush.bf16.msra.mxu0 %v804
        %1111 = vmatpush.bf16.msra.mxu0 %v802
        %1112 = vmatpush.bf16.msra.mxu0 %v800
        %1113 = vmatpush.bf16.msra.mxu0 %v798
        %1114 = vmatmul.bf16.gmra.mxu0 %v1002
        %v1115 = vpop.f32.mrf.mxu0
        %v1116 = vadd.f32 %v831, %v1115
        %v1117 = vpop.f32.mrf.mxu0
        %v1118 = vadd.f32 %v835, %v1117
        %1119 = vmatmul.bf16.gmra.mxu0 %v1005
        %v1120 = vpop.f32.mrf.mxu0
        %v1121 = vadd.f32 %v839, %v1120
        %v1122 = vpop.f32.mrf.mxu0
        %v1123 = vadd.f32 %v843, %v1122
        %1124 = vmatmul.bf16.gmra.mxu0 %v1008
        %v1125 = vpop.f32.mrf.mxu0
        %v1126 = vadd.f32 %v847, %v1125
        %v1127 = vpop.f32.mrf.mxu0
        %v1128 = vadd.f32 %v851, %v1127
        %1129 = vmatmul.bf16.gmra.mxu0 %v1011
        %v1130 = vpop.f32.mrf.mxu0
        %v1131 = vadd.f32 %v855, %v1130
        %v1132 = vpop.f32.mrf.mxu0
        %v1133 = vadd.f32 %v859, %v1132
        %1134 = vmatmul.bf16.gmra.mxu0 %v1014
        %v1135 = vpop.f32.mrf.mxu0
        %v1136 = vadd.f32 %v864, %v1135
        %v1137 = vpop.f32.mrf.mxu0
        %v1138 = vadd.f32 %v869, %v1137
        %1139 = vmatmul.bf16.gmra.mxu0 %v1017
        %v1140 = vpop.f32.mrf.mxu0
        %v1141 = vadd.f32 %v874, %v1140
        %v1142 = vpop.f32.mrf.mxu0
        %v1143 = vadd.f32 %v879, %v1142
        %1144 = vmatmul.bf16.gmra.mxu0 %v1020
        %v1145 = vpop.f32.mrf.mxu0
        %v1146 = vadd.f32 %v884, %v1145
        %v1147 = vpop.f32.mrf.mxu0
        %v1148 = vadd.f32 %v889, %v1147
        %1149 = vmatmul.bf16.gmra.mxu0 %v1023
        %v1150 = vpop.f32.mrf.mxu0
        %v1151 = vadd.f32 %v894, %v1150
        %v1152 = vpop.f32.mrf.mxu0
        %v1153 = vadd.f32 %v899, %v1152
        %1154 = vmatmul.bf16.gmra.mxu0 %v1026
        %v1155 = vpop.f32.mrf.mxu0
        %v1156 = vadd.f32 %v904, %v1155
        %v1157 = vpop.f32.mrf.mxu0
        %v1158 = vadd.f32 %v909, %v1157
        %1159 = vmatmul.bf16.gmra.mxu0 %v1029
        %v1160 = vpop.f32.mrf.mxu0
        %v1161 = vadd.f32 %v914, %v1160
        %v1162 = vpop.f32.mrf.mxu0
        %v1163 = vadd.f32 %v919, %v1162
        %1164 = vmatmul.bf16.gmra.mxu0 %v1032
        %v1165 = vpop.f32.mrf.mxu0
        %v1166 = vadd.f32 %v924, %v1165
        %v1167 = vpop.f32.mrf.mxu0
        %v1168 = vadd.f32 %v929, %v1167
        %1169 = vmatmul.bf16.gmra.mxu0 %v1035
        %v1170 = vpop.f32.mrf.mxu0
        %v1171 = vadd.f32 %v934, %v1170
        %v1172 = vpop.f32.mrf.mxu0
        %v1173 = vadd.f32 %v939, %v1172
        %1174 = vdwg.mxu0
        %v1175 = vpack.c.bf16 %v1116, %v1047
        %v1176 = vpack.c.bf16 %v1118, %v1049
        %v1177 = vpack.c.bf16 %v1121, %v1052
        %v1178 = vpack.c.bf16 %v1123, %v1054
        %v1179 = vpack.c.bf16 %v1126, %v1057
        %v1180 = vpack.c.bf16 %v1128, %v1059
        %v1181 = vpack.c.bf16 %v1131, %v1062
        %v1182 = vpack.c.bf16 %v1133, %v1064
        %v1183 = vpack.c.bf16 %v1136, %v1067
        %v1184 = vpack.c.bf16 %v1138, %v1069
        %v1185 = vpack.c.bf16 %v1141, %v1072
        %v1186 = vpack.c.bf16 %v1143, %v1074
        %v1187 = vpack.c.bf16 %v1146, %v1077
        %v1188 = vpack.c.bf16 %v1148, %v1079
        %v1189 = vpack.c.bf16 %v1151, %v1082
        %v1190 = vpack.c.bf16 %v1153, %v1084
        %v1191 = vpack.c.bf16 %v1156, %v1087
        %v1192 = vpack.c.bf16 %v1158, %v1089
        %v1193 = vpack.c.bf16 %v1161, %v1092
        %v1194 = vpack.c.bf16 %v1163, %v1094
        %v1195 = vpack.c.bf16 %v1166, %v1097
        %v1196 = vpack.c.bf16 %v1168, %v1099
        %v1197 = vpack.c.bf16 %v1171, %v1102
        %v1198 = vpack.c.bf16 %v1173, %v1104
        %1199 = vst [vmem:[#allocation2] sm:$0xff] %v1175
        %1200 = vst [vmem:[#allocation2 + $0x8] sm:$0xff] %v1176
        %1201 = vst [vmem:[#allocation2 + $0x10] sm:$0xff] %v1177
        %1202 = vst [vmem:[#allocation2 + $0x18] sm:$0xff] %v1178
        %1203 = vst [vmem:[#allocation2 + $0x20] sm:$0xff] %v1179
        %1204 = vst [vmem:[#allocation2 + $0x28] sm:$0xff] %v1180
        %1205 = vst [vmem:[#allocation2 + $0x30] sm:$0xff] %v1181
        %1206 = vst [vmem:[#allocation2 + $0x38] sm:$0xff] %v1182
        %1207 = vst [vmem:[#allocation2 + $0x40] sm:$0xff] %v1183
        %1208 = vst [vmem:[#allocation2 + $0x48] sm:$0xff] %v1184
        %1209 = vst [vmem:[#allocation2 + $0x50] sm:$0xff] %v1185
        %1210 = vst [vmem:[#allocation2 + $0x58] sm:$0xff] %v1186
        %1211 = vst [vmem:[#allocation2 + $0x60] sm:$0xff] %v1187
        %1212 = vst [vmem:[#allocation2 + $0x68] sm:$0xff] %v1188
        %1213 = vst [vmem:[#allocation2 + $0x70] sm:$0xff] %v1189
        %1214 = vst [vmem:[#allocation2 + $0x78] sm:$0xff] %v1190
        %1215 = vst [vmem:[#allocation2 + $0x80] sm:$0xff] %v1191
        %1216 = vst [vmem:[#allocation2 + $0x88] sm:$0xff] %v1192
        %1217 = vst [vmem:[#allocation2 + $0x90] sm:$0xff] %v1193
        %1218 = vst [vmem:[#allocation2 + $0x98] sm:$0xff] %v1194
        %1219 = vst [vmem:[#allocation2 + $0xa0] sm:$0xff] %v1195
        %1220 = vst [vmem:[#allocation2 + $0xa8] sm:$0xff] %v1196
        %1221 = vst [vmem:[#allocation2 + $0xb0] sm:$0xff] %v1197
        %1222 = vst [vmem:[#allocation2 + $0xb8] sm:$0xff] %v1198
        loop: start=0, step=1, limit=2
        $region45: #{tpu_custom_call.1} parent=43 // loop_pre_header
          _
        $region46: #{tpu_custom_call.1} parent=43 // loop_header
          %s1224 = sphi 0, %s1228
          %p1225 = scmp.ge.s32.totalorder %s1224, 2
        $region47: #{tpu_custom_call.1} parent=43 // loop_header_branch
          %1227 = sbr.rel (%p1225) target = $region51
        $region48: #{tpu_custom_call.1} parent=43 // loop_body
          %s1229 = smul.u32 %s1224, 96
          %s1230 = sadd.s32 %s1229, 32
          %s1231 = sadd.s32 %s1229, 64
          %s1232 = sshra.s32 %s1229, 3
          %s1233 = sand.u32 %s1229, 7
          %s1234 = smul.u32 %s1232, 2
          %s1235 = smul.addr %s1234, 4
          %s1236 = scalar_lea.vmem [#allocation2], %s1235
          %v1237 = vld [vmem:[%s1236] sm:$0xff]
          %v1238 = vld [vmem:[%s1236 + $0x8] sm:$0xff]
          %v1239 = vld [vmem:[%s1236 + $0x10] sm:$0xff]
          %v1240 = vld [vmem:[%s1236 + $0x18] sm:$0xff]
          loop: start=0, step=1, limit=2
          $region52: #{tpu_custom_call.1} parent=48 // loop_pre_header
            _
          $region53: #{tpu_custom_call.1} parent=48 // loop_header
            %s1242 = sphi 0, %s1246
            %p1243 = scmp.ge.s32.totalorder %s1242, 2
            %v1247 = vphi -1e+30, %v1494
            %v1248 = vphi -1e+30, %v1495
            %v1249 = vphi 0.0, %v1642
            %v1250 = vphi 0.0, %v1643
            %v1251 = vphi 0.0, %v1718
            %v1252 = vphi 0.0, %v1719
            %v1253 = vphi 0.0, %v1720
            %v1254 = vphi 0.0, %v1721
            %v1255 = vphi 0.0, %v1722
            %v1256 = vphi 0.0, %v1723
            %v1257 = vphi 0.0, %v1724
            %v1258 = vphi 0.0, %v1725
          $region54: #{tpu_custom_call.1} parent=48 // loop_header_branch
            %1245 = sbr.rel (%p1243) target = $region58
          $region55: #{tpu_custom_call.1} parent=48 // loop_body
            %s1259 = smul.u32 %s1242, 128
            %s1260 = sshra.s32 %s1259, 7
            %s1261 = sand.u32 %s1259, 127
            %s1262 = sshra.s32 %s1230, 3
            %s1263 = sand.u32 %s1230, 7
            %s1264 = smul.u32 %s1262, 2
            %s1265 = sadd.s32 %s1260, %s1264
            %s1266 = smul.addr %s1265, 4
            %s1267 = scalar_lea.vmem [#allocation2], %s1266
            %v1268 = vld [vmem:[%s1267] sm:$0xf]
            %v1269 = vld [vmem:[%s1267 + $0x8] sm:$0xf]
            %v1270 = vld [vmem:[%s1267 + $0x10] sm:$0xf]
            %v1271 = vld [vmem:[%s1267 + $0x18] sm:$0xf]
            %s1272 = sshra.s32 %s1231, 3
            %s1273 = sand.u32 %s1231, 7
            %s1274 = smul.u32 %s1272, 2
            %s1275 = sadd.s32 %s1260, %s1274
            %s1276 = smul.addr %s1275, 4
            %s1277 = scalar_lea.vmem [#allocation2], %s1276
            %v1278 = vld [vmem:[%s1277] sm:$0xf]
            %v1279 = vld [vmem:[%s1277 + $0x8] sm:$0xf]
            %v1280 = vld [vmem:[%s1277 + $0x10] sm:$0xf]
            %v1281 = vld [vmem:[%s1277 + $0x18] sm:$0xf]
            %v1286 = vunpack.c.l.b16 %v1268
            %v1287 = vunpack.c.l.b16 %v1269
            %v1288 = vunpack.c.l.b16 %v1270
            %v1289 = vunpack.c.l.b16 %v1271
            %v1290 = vpack.c.b16 %v1287, %v1286
            %v1291 = vpack.c.b16 %v1289, %v1288
            %1294 = vxpose.xlu0.c.b16.start [1/8] %v1290, 128
            %1295 = vxpose.xlu0.c.b16.cont [2/8] %v1291, 128
            %1296 = vxpose.xlu0.c.b16.cont [3/8] 0, 128
            %1297 = vxpose.xlu0.c.b16.cont [4/8] 0, 128
            %1298 = vxpose.xlu0.c.b16.cont [5/8] 0, 128
            %1299 = vxpose.xlu0.c.b16.cont [6/8] 0, 128
            %1300 = vxpose.xlu0.c.b16.cont [7/8] 0, 128
            %1301 = vxpose.xlu0.c.b16.end [8/8] 0, 128
            %v1302 = vpop.trf.xlu0
            %v1303 = vpop.trf.xlu0
            %v1304 = vpop.trf.xlu0
            %v1305 = vpop.trf.xlu0
            %v1306 = vpop.trf.xlu0
            %v1307 = vpop.trf.xlu0
            %v1308 = vpop.trf.xlu0
            %v1309 = vpop.trf.xlu0
            %v1314 = vunpack.c.l.b16 %v1237
            %v1315 = vunpack.c.h.b16 %v1237
            %v1316 = vunpack.c.l.b16 %v1238
            %v1317 = vunpack.c.h.b16 %v1238
            %v1318 = vunpack.c.l.b16 %v1239
            %v1319 = vunpack.c.h.b16 %v1239
            %v1320 = vunpack.c.l.b16 %v1240
            %v1321 = vunpack.c.h.b16 %v1240
            %v1322 = vpack.c.b16 %v1316, %v1314
            %v1323 = vpack.c.b16 %v1317, %v1315
            %v1324 = vpack.c.b16 %v1320, %v1318
            %v1325 = vpack.c.b16 %v1321, %v1319
            %v1331 = vsel %vm373, %v1302, 0
            %v1334 = vsel %vm373, %v1303, 0
            %v1337 = vsel %vm373, %v1304, 0
            %v1340 = vsel %vm373, %v1305, 0
            %v1343 = vsel %vm373, %v1306, 0
            %v1346 = vsel %vm373, %v1307, 0
            %v1349 = vsel %vm373, %v1308, 0
            %v1352 = vsel %vm373, %v1309, 0
            %1354 = vmatpush.bf16.msra.mxu0 0
            %1355 = vmatpush.bf16.msra.mxu0 0
            %1356 = vmatpush.bf16.msra.mxu0 0
            %1357 = vmatpush.bf16.msra.mxu0 0
            %1358 = vmatpush.bf16.msra.mxu0 0
            %1359 = vmatpush.bf16.msra.mxu0 0
            %1360 = vmatpush.bf16.msra.mxu0 %v1324
            %1361 = vmatpush.bf16.msra.mxu0 %v1322
            %1362 = vmatmul.bf16.gmra.mxu0 %v1331
            %v1363 = vpop.f32.mrf.mxu0
            %v1364 = vadd.f32 0.0, %v1363
            %v1365 = vpop.f32.mrf.mxu0
            %v1366 = vadd.f32 0.0, %v1365
            %1367 = vmatmul.bf16.gmra.mxu0 %v1334
            %v1368 = vpop.f32.mrf.mxu0
            %v1369 = vadd.f32 0.0, %v1368
            %v1370 = vpop.f32.mrf.mxu0
            %v1371 = vadd.f32 0.0, %v1370
            %1372 = vmatmul.bf16.gmra.mxu0 %v1337
            %v1373 = vpop.f32.mrf.mxu0
            %v1374 = vadd.f32 0.0, %v1373
            %v1375 = vpop.f32.mrf.mxu0
            %v1376 = vadd.f32 0.0, %v1375
            %1377 = vmatmul.bf16.gmra.mxu0 %v1340
            %v1378 = vpop.f32.mrf.mxu0
            %v1379 = vadd.f32 0.0, %v1378
            %v1380 = vpop.f32.mrf.mxu0
            %v1381 = vadd.f32 0.0, %v1380
            %1382 = vmatmul.bf16.gmra.mxu0 %v1343
            %v1383 = vpop.f32.mrf.mxu0
            %v1384 = vadd.f32 0.0, %v1383
            %v1385 = vpop.f32.mrf.mxu0
            %v1386 = vadd.f32 0.0, %v1385
            %1387 = vmatmul.bf16.gmra.mxu0 %v1346
            %v1388 = vpop.f32.mrf.mxu0
            %v1389 = vadd.f32 0.0, %v1388
            %v1390 = vpop.f32.mrf.mxu0
            %v1391 = vadd.f32 0.0, %v1390
            %1392 = vmatmul.bf16.gmra.mxu0 %v1349
            %v1393 = vpop.f32.mrf.mxu0
            %v1394 = vadd.f32 0.0, %v1393
            %v1395 = vpop.f32.mrf.mxu0
            %v1396 = vadd.f32 0.0, %v1395
            %1397 = vmatmul.bf16.gmra.mxu0 %v1352
            %v1398 = vpop.f32.mrf.mxu0
            %v1399 = vadd.f32 0.0, %v1398
            %v1400 = vpop.f32.mrf.mxu0
            %v1401 = vadd.f32 0.0, %v1400
            %1402 = vdwg.mxu0
            %1403 = vmatpush.bf16.msra.mxu0 0
            %1404 = vmatpush.bf16.msra.mxu0 0
            %1405 = vmatpush.bf16.msra.mxu0 0
            %1406 = vmatpush.bf16.msra.mxu0 0
            %1407 = vmatpush.bf16.msra.mxu0 0
            %1408 = vmatpush.bf16.msra.mxu0 0
            %1409 = vmatpush.bf16.msra.mxu0 %v1325
            %1410 = vmatpush.bf16.msra.mxu0 %v1323
            %1411 = vmatmul.bf16.gmra.mxu0 %v1331
            %v1412 = vpop.f32.mrf.mxu0
            %v1413 = vadd.f32 0.0, %v1412
            %v1414 = vpop.f32.mrf.mxu0
            %v1415 = vadd.f32 0.0, %v1414
            %1416 = vmatmul.bf16.gmra.mxu0 %v1334
            %v1417 = vpop.f32.mrf.mxu0
            %v1418 = vadd.f32 0.0, %v1417
            %v1419 = vpop.f32.mrf.mxu0
            %v1420 = vadd.f32 0.0, %v1419
            %1421 = vmatmul.bf16.gmra.mxu0 %v1337
            %v1422 = vpop.f32.mrf.mxu0
            %v1423 = vadd.f32 0.0, %v1422
            %v1424 = vpop.f32.mrf.mxu0
            %v1425 = vadd.f32 0.0, %v1424
            %1426 = vmatmul.bf16.gmra.mxu0 %v1340
            %v1427 = vpop.f32.mrf.mxu0
            %v1428 = vadd.f32 0.0, %v1427
            %v1429 = vpop.f32.mrf.mxu0
            %v1430 = vadd.f32 0.0, %v1429
            %1431 = vmatmul.bf16.gmra.mxu0 %v1343
            %v1432 = vpop.f32.mrf.mxu0
            %v1433 = vadd.f32 0.0, %v1432
            %v1434 = vpop.f32.mrf.mxu0
            %v1435 = vadd.f32 0.0, %v1434
            %1436 = vmatmul.bf16.gmra.mxu0 %v1346
            %v1437 = vpop.f32.mrf.mxu0
            %v1438 = vadd.f32 0.0, %v1437
            %v1439 = vpop.f32.mrf.mxu0
            %v1440 = vadd.f32 0.0, %v1439
            %1441 = vmatmul.bf16.gmra.mxu0 %v1349
            %v1442 = vpop.f32.mrf.mxu0
            %v1443 = vadd.f32 0.0, %v1442
            %v1444 = vpop.f32.mrf.mxu0
            %v1445 = vadd.f32 0.0, %v1444
            %1446 = vmatmul.bf16.gmra.mxu0 %v1352
            %v1447 = vpop.f32.mrf.mxu0
            %v1448 = vadd.f32 0.0, %v1447
            %v1449 = vpop.f32.mrf.mxu0
            %v1450 = vadd.f32 0.0, %v1449
            %1451 = vdwg.mxu0
            %v1452 = vmax.f32 %v1364, %v1369
            %v1453 = vmax.f32 %v1366, %v1371
            %v1454 = vmax.f32 %v1452, %v1374
            %v1455 = vmax.f32 %v1453, %v1376
            %v1456 = vmax.f32 %v1454, %v1379
            %v1457 = vmax.f32 %v1455, %v1381
            %v1458 = vmax.f32 %v1456, %v1384
            %v1459 = vmax.f32 %v1457, %v1386
            %v1460 = vmax.f32 %v1458, %v1389
            %v1461 = vmax.f32 %v1459, %v1391
            %v1462 = vmax.f32 %v1460, %v1394
            %v1463 = vmax.f32 %v1461, %v1396
            %v1464 = vmax.f32 %v1462, %v1399
            %v1465 = vmax.f32 %v1463, %v1401
            %v1466 = vmax.f32 %v1464, %v1465
            %v1467 = vrot.slane %v1466, 4
            %v1468 = vmax.f32 %v1466, %v1467
            %v1469 = vrot.slane %v1468, 2
            %v1470 = vmax.f32 %v1468, %v1469
            %v1471 = vrot.slane %v1470, 1
            %v1472 = vmax.f32 %v1470, %v1471
            %v1473 = vmax.f32 %v1413, %v1418
            %v1474 = vmax.f32 %v1415, %v1420
            %v1475 = vmax.f32 %v1473, %v1423
            %v1476 = vmax.f32 %v1474, %v1425
            %v1477 = vmax.f32 %v1475, %v1428
            %v1478 = vmax.f32 %v1476, %v1430
            %v1479 = vmax.f32 %v1477, %v1433
            %v1480 = vmax.f32 %v1478, %v1435
            %v1481 = vmax.f32 %v1479, %v1438
            %v1482 = vmax.f32 %v1480, %v1440
            %v1483 = vmax.f32 %v1481, %v1443
            %v1484 = vmax.f32 %v1482, %v1445
            %v1485 = vmax.f32 %v1483, %v1448
            %v1486 = vmax.f32 %v1484, %v1450
            %v1487 = vmax.f32 %v1485, %v1486
            %v1488 = vrot.slane %v1487, 4
            %v1489 = vmax.f32 %v1487, %v1488
            %v1490 = vrot.slane %v1489, 2
            %v1491 = vmax.f32 %v1489, %v1490
            %v1492 = vrot.slane %v1491, 1
            %v1493 = vmax.f32 %v1491, %v1492
            %v1494 = vmax.f32 %v1247, %v1472
            %v1495 = vmax.f32 %v1248, %v1493
            %v1496 = vsub.f32 %v1247, %v1494
            %v1497 = vsub.f32 %v1248, %v1495
            %v1498 = vmul.f32 %v1496, 1.442695
            %v1499 = vpow.pop %v1498
            %v1500 = vmul.f32 %v1497, 1.442695
            %v1501 = vpow.pop %v1500
            %v1502 = vsub.f32 %v1364, %v1494
            %v1503 = vsub.f32 %v1413, %v1495
            %v1504 = vsub.f32 %v1366, %v1494
            %v1505 = vsub.f32 %v1415, %v1495
            %v1506 = vsub.f32 %v1369, %v1494
            %v1507 = vsub.f32 %v1418, %v1495
            %v1508 = vsub.f32 %v1371, %v1494
            %v1509 = vsub.f32 %v1420, %v1495
            %v1510 = vsub.f32 %v1374, %v1494
            %v1511 = vsub.f32 %v1423, %v1495
            %v1512 = vsub.f32 %v1376, %v1494
            %v1513 = vsub.f32 %v1425, %v1495
            %v1514 = vsub.f32 %v1379, %v1494
            %v1515 = vsub.f32 %v1428, %v1495
            %v1516 = vsub.f32 %v1381, %v1494
            %v1517 = vsub.f32 %v1430, %v1495
            %v1518 = vsub.f32 %v1384, %v1494
            %v1519 = vsub.f32 %v1433, %v1495
            %v1520 = vsub.f32 %v1386, %v1494
            %v1521 = vsub.f32 %v1435, %v1495
            %v1522 = vsub.f32 %v1389, %v1494
            %v1523 = vsub.f32 %v1438, %v1495
            %v1524 = vsub.f32 %v1391, %v1494
            %v1525 = vsub.f32 %v1440, %v1495
            %v1526 = vsub.f32 %v1394, %v1494
            %v1527 = vsub.f32 %v1443, %v1495
            %v1528 = vsub.f32 %v1396, %v1494
            %v1529 = vsub.f32 %v1445, %v1495
            %v1530 = vsub.f32 %v1399, %v1494
            %v1531 = vsub.f32 %v1448, %v1495
            %v1532 = vsub.f32 %v1401, %v1494
            %v1533 = vsub.f32 %v1450, %v1495
            %v1534 = vmul.f32 %v1502, 1.442695
            %v1535 = vpow.pop %v1534
            %v1536 = vmul.f32 %v1503, 1.442695
            %v1537 = vpow.pop %v1536
            %v1538 = vmul.f32 %v1504, 1.442695
            %v1539 = vpow.pop %v1538
            %v1540 = vmul.f32 %v1505, 1.442695
            %v1541 = vpow.pop %v1540
            %v1542 = vmul.f32 %v1506, 1.442695
            %v1543 = vpow.pop %v1542
            %v1544 = vmul.f32 %v1507, 1.442695
            %v1545 = vpow.pop %v1544
            %v1546 = vmul.f32 %v1508, 1.442695
            %v1547 = vpow.pop %v1546
            %v1548 = vmul.f32 %v1509, 1.442695
            %v1549 = vpow.pop %v1548
            %v1550 = vmul.f32 %v1510, 1.442695
            %v1551 = vpow.pop %v1550
            %v1552 = vmul.f32 %v1511, 1.442695
            %v1553 = vpow.pop %v1552
            %v1554 = vmul.f32 %v1512, 1.442695
            %v1555 = vpow.pop %v1554
            %v1556 = vmul.f32 %v1513, 1.442695
            %v1557 = vpow.pop %v1556
            %v1558 = vmul.f32 %v1514, 1.442695
            %v1559 = vpow.pop %v1558
            %v1560 = vmul.f32 %v1515, 1.442695
            %v1561 = vpow.pop %v1560
            %v1562 = vmul.f32 %v1516, 1.442695
            %v1563 = vpow.pop %v1562
            %v1564 = vmul.f32 %v1517, 1.442695
            %v1565 = vpow.pop %v1564
            %v1566 = vmul.f32 %v1518, 1.442695
            %v1567 = vpow.pop %v1566
            %v1568 = vmul.f32 %v1519, 1.442695
            %v1569 = vpow.pop %v1568
            %v1570 = vmul.f32 %v1520, 1.442695
            %v1571 = vpow.pop %v1570
            %v1572 = vmul.f32 %v1521, 1.442695
            %v1573 = vpow.pop %v1572
            %v1574 = vmul.f32 %v1522, 1.442695
            %v1575 = vpow.pop %v1574
            %v1576 = vmul.f32 %v1523, 1.442695
            %v1577 = vpow.pop %v1576
            %v1578 = vmul.f32 %v1524, 1.442695
            %v1579 = vpow.pop %v1578
            %v1580 = vmul.f32 %v1525, 1.442695
            %v1581 = vpow.pop %v1580
            %v1582 = vmul.f32 %v1526, 1.442695
            %v1583 = vpow.pop %v1582
            %v1584 = vmul.f32 %v1527, 1.442695
            %v1585 = vpow.pop %v1584
            %v1586 = vmul.f32 %v1528, 1.442695
            %v1587 = vpow.pop %v1586
            %v1588 = vmul.f32 %v1529, 1.442695
            %v1589 = vpow.pop %v1588
            %v1590 = vmul.f32 %v1530, 1.442695
            %v1591 = vpow.pop %v1590
            %v1592 = vmul.f32 %v1531, 1.442695
            %v1593 = vpow.pop %v1592
            %v1594 = vmul.f32 %v1532, 1.442695
            %v1595 = vpow.pop %v1594
            %v1596 = vmul.f32 %v1533, 1.442695
            %v1597 = vpow.pop %v1596
            %v1598 = vmul.f32 %v1499, %v1249
            %v1599 = vmul.f32 %v1501, %v1250
            %v1600 = vadd.f32 %v1535, %v1539
            %v1601 = vadd.f32 %v1600, %v1543
            %v1602 = vadd.f32 %v1601, %v1547
            %v1603 = vadd.f32 %v1602, %v1551
            %v1604 = vadd.f32 %v1603, %v1555
            %v1605 = vadd.f32 %v1604, %v1559
            %v1606 = vadd.f32 %v1605, %v1563
            %v1607 = vadd.f32 %v1606, %v1567
            %v1608 = vadd.f32 %v1607, %v1571
            %v1609 = vadd.f32 %v1608, %v1575
            %v1610 = vadd.f32 %v1609, %v1579
            %v1611 = vadd.f32 %v1610, %v1583
            %v1612 = vadd.f32 %v1611, %v1587
            %v1613 = vadd.f32 %v1612, %v1591
            %v1614 = vadd.f32 %v1613, %v1595
            %v1615 = vrot.slane %v1614, 4
            %v1616 = vadd.f32 %v1614, %v1615
            %v1617 = vrot.slane %v1616, 2
            %v1618 = vadd.f32 %v1616, %v1617
            %v1619 = vrot.slane %v1618, 1
            %v1620 = vadd.f32 %v1618, %v1619
            %v1621 = vadd.f32 %v1537, %v1541
            %v1622 = vadd.f32 %v1621, %v1545
            %v1623 = vadd.f32 %v1622, %v1549
            %v1624 = vadd.f32 %v1623, %v1553
            %v1625 = vadd.f32 %v1624, %v1557
            %v1626 = vadd.f32 %v1625, %v1561
            %v1627 = vadd.f32 %v1626, %v1565
            %v1628 = vadd.f32 %v1627, %v1569
            %v1629 = vadd.f32 %v1628, %v1573
            %v1630 = vadd.f32 %v1629, %v1577
            %v1631 = vadd.f32 %v1630, %v1581
            %v1632 = vadd.f32 %v1631, %v1585
            %v1633 = vadd.f32 %v1632, %v1589
            %v1634 = vadd.f32 %v1633, %v1593
            %v1635 = vadd.f32 %v1634, %v1597
            %v1636 = vrot.slane %v1635, 4
            %v1637 = vadd.f32 %v1635, %v1636
            %v1638 = vrot.slane %v1637, 2
            %v1639 = vadd.f32 %v1637, %v1638
            %v1640 = vrot.slane %v1639, 1
            %v1641 = vadd.f32 %v1639, %v1640
            %v1642 = vadd.f32 %v1598, %v1620
            %v1643 = vadd.f32 %v1599, %v1641
            %v1644 = vpack.c.bf16 %v1539, %v1535
            %v1645 = vpack.c.bf16 %v1541, %v1537
            %v1646 = vpack.c.bf16 %v1547, %v1543
            %v1647 = vpack.c.bf16 %v1549, %v1545
            %v1648 = vpack.c.bf16 %v1555, %v1551
            %v1649 = vpack.c.bf16 %v1557, %v1553
            %v1650 = vpack.c.bf16 %v1563, %v1559
            %v1651 = vpack.c.bf16 %v1565, %v1561
            %v1652 = vpack.c.bf16 %v1571, %v1567
            %v1653 = vpack.c.bf16 %v1573, %v1569
            %v1654 = vpack.c.bf16 %v1579, %v1575
            %v1655 = vpack.c.bf16 %v1581, %v1577
            %v1656 = vpack.c.bf16 %v1587, %v1583
            %v1657 = vpack.c.bf16 %v1589, %v1585
            %v1658 = vpack.c.bf16 %v1595, %v1591
            %v1659 = vpack.c.bf16 %v1597, %v1593
            %v1664 = vunpack.c.l.b16 %v1278
            %v1665 = vunpack.c.l.b16 %v1279
            %v1666 = vunpack.c.l.b16 %v1280
            %v1667 = vunpack.c.l.b16 %v1281
            %v1668 = vpack.c.b16 %v1665, %v1664
            %v1669 = vpack.c.b16 %v1667, %v1666
            %1672 = vmatpush.bf16.msra.mxu0 %v1658
            %1673 = vmatpush.bf16.msra.mxu0 %v1656
            %1674 = vmatpush.bf16.msra.mxu0 %v1654
            %1675 = vmatpush.bf16.msra.mxu0 %v1652
            %1676 = vmatpush.bf16.msra.mxu0 %v1650
            %1677 = vmatpush.bf16.msra.mxu0 %v1648
            %1678 = vmatpush.bf16.msra.mxu0 %v1646
            %1679 = vmatpush.bf16.msra.mxu0 %v1644
            %1680 = vmatmul.bf16.gmra.mxu0 %v1668
            %v1681 = vpop.f32.mrf.mxu0
            %v1682 = vadd.f32 0.0, %v1681
            %v1683 = vpop.f32.mrf.mxu0
            %v1684 = vadd.f32 0.0, %v1683
            %1685 = vmatmul.bf16.gmra.mxu0 %v1669
            %v1686 = vpop.f32.mrf.mxu0
            %v1687 = vadd.f32 0.0, %v1686
            %v1688 = vpop.f32.mrf.mxu0
            %v1689 = vadd.f32 0.0, %v1688
            %1690 = vdwg.mxu0
            %1691 = vmatpush.bf16.msra.mxu0 %v1659
            %1692 = vmatpush.bf16.msra.mxu0 %v1657
            %1693 = vmatpush.bf16.msra.mxu0 %v1655
            %1694 = vmatpush.bf16.msra.mxu0 %v1653
            %1695 = vmatpush.bf16.msra.mxu0 %v1651
            %1696 = vmatpush.bf16.msra.mxu0 %v1649
            %1697 = vmatpush.bf16.msra.mxu0 %v1647
            %1698 = vmatpush.bf16.msra.mxu0 %v1645
            %1699 = vmatmul.bf16.gmra.mxu0 %v1668
            %v1700 = vpop.f32.mrf.mxu0
            %v1701 = vadd.f32 0.0, %v1700
            %v1702 = vpop.f32.mrf.mxu0
            %v1703 = vadd.f32 0.0, %v1702
            %1704 = vmatmul.bf16.gmra.mxu0 %v1669
            %v1705 = vpop.f32.mrf.mxu0
            %v1706 = vadd.f32 0.0, %v1705
            %v1707 = vpop.f32.mrf.mxu0
            %v1708 = vadd.f32 0.0, %v1707
            %1709 = vdwg.mxu0
            %v1710 = vmul.f32 %v1499, %v1251
            %v1711 = vmul.f32 %v1501, %v1252
            %v1712 = vmul.f32 %v1499, %v1253
            %v1713 = vmul.f32 %v1501, %v1254
            %v1714 = vmul.f32 %v1499, %v1255
            %v1715 = vmul.f32 %v1501, %v1256
            %v1716 = vmul.f32 %v1499, %v1257
            %v1717 = vmul.f32 %v1501, %v1258
            %v1718 = vadd.f32 %v1710, %v1682
            %v1719 = vadd.f32 %v1711, %v1701
            %v1720 = vadd.f32 %v1712, %v1684
            %v1721 = vadd.f32 %v1713, %v1703
            %v1722 = vadd.f32 %v1714, %v1687
            %v1723 = vadd.f32 %v1715, %v1706
            %v1724 = vadd.f32 %v1716, %v1689
            %v1725 = vadd.f32 %v1717, %v1708
          $region56: #{tpu_custom_call.1} parent=48 // loop_footer
            %s1246 = sadd.s32 1, %s1242
          $region57: #{tpu_custom_call.1} parent=48 // loop_footer_branch
            %1241 = sbr.rel target = $region53
          $region58: #{tpu_custom_call.1} parent=48 // loop_exit
            _
          %s1726 = smul.u32 %s1224, 32
          %v1727 = vrcp.pop %v1249
          %v1728 = vmul.f32 %v1249, %v1727
          %v1729 = vsub.f32 1.0, %v1728
          %v1730 = vmul.f32 %v1727, %v1729
          %v1731 = vadd.f32 %v1727, %v1730
          %vm1732 = vweird.f32 %v1249
          %vm1733 = vweird.f32 %v1727
          %vm1734 = vmor %vm1732, %vm1733
          %v1735 = vsel %vm1734, %v1727, %v1731
          %v1736 = vand.u32 2147483647, %v1249
          %vm1737 = vcmp.eq.f32.partialorder %v1736, 8.507059e+37
          %v1738 = vand.u32 %v1249, 2147483648
          %v1739 = vor.u32 1.1754944e-38, %v1738
          %v1740 = vsel %vm1737, %v1739, %v1735
          %v1741 = vrcp.pop %v1250
          %v1742 = vmul.f32 %v1250, %v1741
          %v1743 = vsub.f32 1.0, %v1742
          %v1744 = vmul.f32 %v1741, %v1743
          %v1745 = vadd.f32 %v1741, %v1744
          %vm1746 = vweird.f32 %v1250
          %vm1747 = vweird.f32 %v1741
          %vm1748 = vmor %vm1746, %vm1747
          %v1749 = vsel %vm1748, %v1741, %v1745
          %v1750 = vand.u32 2147483647, %v1250
          %vm1751 = vcmp.eq.f32.partialorder %v1750, 8.507059e+37
          %v1752 = vand.u32 %v1250, 2147483648
          %v1753 = vor.u32 1.1754944e-38, %v1752
          %v1754 = vsel %vm1751, %v1753, %v1749
          %v1755 = vmul.f32 %v1251, %v1740
          %v1756 = vmul.f32 %v1252, %v1754
          %v1757 = vmul.f32 %v1253, %v1740
          %v1758 = vmul.f32 %v1254, %v1754
          %v1759 = vmul.f32 %v1255, %v1740
          %v1760 = vmul.f32 %v1256, %v1754
          %v1761 = vmul.f32 %v1257, %v1740
          %v1762 = vmul.f32 %v1258, %v1754
          %v1763 = vpack.c.bf16 %v1756, %v1755
          %v1764 = vpack.c.bf16 %v1758, %v1757
          %v1765 = vpack.c.bf16 %v1760, %v1759
          %v1766 = vpack.c.bf16 %v1762, %v1761
          %s1767 = sshra.s32 %s1726, 3
          %s1768 = sand.u32 %s1726, 7
          %s1769 = smul.u32 %s1767, 2
          %s1770 = smul.addr %s1769, 4
          %s1771 = scalar_lea.vmem [#allocation3], %s1770
          %1772 = vst [vmem:[%s1771] sm:$0xff] %v1763
          %1773 = vst [vmem:[%s1771 + $0x8] sm:$0xff] %v1764
          %1774 = vst [vmem:[%s1771 + $0x10] sm:$0xff] %v1765
          %1775 = vst [vmem:[%s1771 + $0x18] sm:$0xff] %v1766
        $region49: #{tpu_custom_call.1} parent=43 // loop_footer
          %s1228 = sadd.s32 1, %s1224
        $region50: #{tpu_custom_call.1} parent=43 // loop_footer_branch
          %1223 = sbr.rel target = $region46
        $region51: #{tpu_custom_call.1} parent=43 // loop_exit
          _
        %v1776 = vld [vmem:[%s5] sm:$0xf]
        %v1777 = vld [vmem:[%s5 + $0x4] sm:$0xf]
        %v1778 = vld [vmem:[%s5 + $0x8] sm:$0xf]
        %v1779 = vld [vmem:[%s5 + $0xc] sm:$0xf]
        %v1780 = vld [vmem:[%s5 + $0x10] sm:$0xf]
        %v1781 = vld [vmem:[%s5 + $0x14] sm:$0xf]
        %v1782 = vld [vmem:[%s5 + $0x18] sm:$0xf]
        %v1783 = vld [vmem:[%s5 + $0x1c] sm:$0xf]
        %v1784 = vld [vmem:[#allocation3] sm:$0xff]
        %v1785 = vld [vmem:[#allocation3 + $0x8] sm:$0xff]
        %v1786 = vld [vmem:[#allocation3 + $0x10] sm:$0xff]
        %v1787 = vld [vmem:[#allocation3 + $0x18] sm:$0xff]
        %v1788 = vld [vmem:[#allocation3 + $0x20] sm:$0xff]
        %v1789 = vld [vmem:[#allocation3 + $0x28] sm:$0xff]
        %v1790 = vld [vmem:[#allocation3 + $0x30] sm:$0xff]
        %v1791 = vld [vmem:[#allocation3 + $0x38] sm:$0xff]
        %v1800 = vunpack.c.l.b16 %v1776
        %v1801 = vunpack.c.l.b16 %v1777
        %v1802 = vunpack.c.l.b16 %v1778
        %v1803 = vunpack.c.l.b16 %v1779
        %v1804 = vunpack.c.l.b16 %v1780
        %v1805 = vunpack.c.l.b16 %v1781
        %v1806 = vunpack.c.l.b16 %v1782
        %v1807 = vunpack.c.l.b16 %v1783
        %v1808 = vpack.c.b16 %v1801, %v1800
        %v1809 = vpack.c.b16 %v1803, %v1802
        %v1810 = vpack.c.b16 %v1805, %v1804
        %v1811 = vpack.c.b16 %v1807, %v1806
        %v1820 = vunpack.c.l.b16 %v1784
        %v1821 = vunpack.c.h.b16 %v1784
        %v1822 = vunpack.c.l.b16 %v1785
        %v1823 = vunpack.c.h.b16 %v1785
        %v1824 = vunpack.c.l.b16 %v1786
        %v1825 = vunpack.c.h.b16 %v1786
        %v1826 = vunpack.c.l.b16 %v1787
        %v1827 = vunpack.c.h.b16 %v1787
        %v1828 = vunpack.c.l.b16 %v1788
        %v1829 = vunpack.c.h.b16 %v1788
        %v1830 = vunpack.c.l.b16 %v1789
        %v1831 = vunpack.c.h.b16 %v1789
        %v1832 = vunpack.c.l.b16 %v1790
        %v1833 = vunpack.c.h.b16 %v1790
        %v1834 = vunpack.c.l.b16 %v1791
        %v1835 = vunpack.c.h.b16 %v1791
        %v1836 = vpack.c.b16 %v1822, %v1820
        %v1837 = vpack.c.b16 %v1823, %v1821
        %v1838 = vpack.c.b16 %v1826, %v1824
        %v1839 = vpack.c.b16 %v1827, %v1825
        %v1840 = vpack.c.b16 %v1830, %v1828
        %v1841 = vpack.c.b16 %v1831, %v1829
        %v1842 = vpack.c.b16 %v1834, %v1832
        %v1843 = vpack.c.b16 %v1835, %v1833
        %v1853 = vsel %vm319, %v1808, 0
        %v1856 = vsel %vm319, %v1809, 0
        %v1859 = vsel %vm319, %v1810, 0
        %v1862 = vsel %vm319, %v1811, 0
        %1864 = vmatpush.bf16.msra.mxu0 0
        %1865 = vmatpush.bf16.msra.mxu0 0
        %1866 = vmatpush.bf16.msra.mxu0 0
        %1867 = vmatpush.bf16.msra.mxu0 0
        %1868 = vmatpush.bf16.msra.mxu0 %v1842
        %1869 = vmatpush.bf16.msra.mxu0 %v1840
        %1870 = vmatpush.bf16.msra.mxu0 %v1838
        %1871 = vmatpush.bf16.msra.mxu0 %v1836
        %1872 = vmatmul.bf16.gmra.mxu0 %v1853
        %v1873 = vpop.f32.mrf.mxu0
        %v1874 = vadd.f32 0.0, %v1873
        %v1875 = vpop.f32.mrf.mxu0
        %v1876 = vadd.f32 0.0, %v1875
        %1877 = vmatmul.bf16.gmra.mxu0 %v1856
        %v1878 = vpop.f32.mrf.mxu0
        %v1879 = vadd.f32 0.0, %v1878
        %v1880 = vpop.f32.mrf.mxu0
        %v1881 = vadd.f32 0.0, %v1880
        %1882 = vmatmul.bf16.gmra.mxu0 %v1859
        %v1883 = vpop.f32.mrf.mxu0
        %v1884 = vadd.f32 0.0, %v1883
        %v1885 = vpop.f32.mrf.mxu0
        %v1886 = vadd.f32 0.0, %v1885
        %1887 = vmatmul.bf16.gmra.mxu0 %v1862
        %v1888 = vpop.f32.mrf.mxu0
        %v1889 = vadd.f32 0.0, %v1888
        %v1890 = vpop.f32.mrf.mxu0
        %v1891 = vadd.f32 0.0, %v1890
        %1892 = vdwg.mxu0
        %1893 = vmatpush.bf16.msra.mxu0 0
        %1894 = vmatpush.bf16.msra.mxu0 0
        %1895 = vmatpush.bf16.msra.mxu0 0
        %1896 = vmatpush.bf16.msra.mxu0 0
        %1897 = vmatpush.bf16.msra.mxu0 %v1843
        %1898 = vmatpush.bf16.msra.mxu0 %v1841
        %1899 = vmatpush.bf16.msra.mxu0 %v1839
        %1900 = vmatpush.bf16.msra.mxu0 %v1837
        %1901 = vmatmul.bf16.gmra.mxu0 %v1853
        %v1902 = vpop.f32.mrf.mxu0
        %v1903 = vadd.f32 0.0, %v1902
        %v1904 = vpop.f32.mrf.mxu0
        %v1905 = vadd.f32 0.0, %v1904
        %1906 = vmatmul.bf16.gmra.mxu0 %v1856
        %v1907 = vpop.f32.mrf.mxu0
        %v1908 = vadd.f32 0.0, %v1907
        %v1909 = vpop.f32.mrf.mxu0
        %v1910 = vadd.f32 0.0, %v1909
        %1911 = vmatmul.bf16.gmra.mxu0 %v1859
        %v1912 = vpop.f32.mrf.mxu0
        %v1913 = vadd.f32 0.0, %v1912
        %v1914 = vpop.f32.mrf.mxu0
        %v1915 = vadd.f32 0.0, %v1914
        %1916 = vmatmul.bf16.gmra.mxu0 %v1862
        %v1917 = vpop.f32.mrf.mxu0
        %v1918 = vadd.f32 0.0, %v1917
        %v1919 = vpop.f32.mrf.mxu0
        %v1920 = vadd.f32 0.0, %v1919
        %1921 = vdwg.mxu0
        %v1922 = vadd.f32 %v251, %v1874
        %v1923 = vadd.f32 %v252, %v1903
        %v1924 = vadd.f32 %v253, %v1876
        %v1925 = vadd.f32 %v254, %v1905
        %v1926 = vadd.f32 %v255, %v1879
        %v1927 = vadd.f32 %v256, %v1908
        %v1928 = vadd.f32 %v257, %v1881
        %v1929 = vadd.f32 %v258, %v1910
        %v1930 = vadd.f32 %v259, %v1884
        %v1931 = vadd.f32 %v260, %v1913
        %v1932 = vadd.f32 %v261, %v1886
        %v1933 = vadd.f32 %v262, %v1915
        %v1934 = vadd.f32 %v263, %v1889
        %v1935 = vadd.f32 %v264, %v1918
        %v1936 = vadd.f32 %v265, %v1891
        %v1937 = vadd.f32 %v266, %v1920
        %1938 = vset.pattern.permute.xlu0 3
        %1939 = vperm.xlu0 %1938, %v267
        %v1940 = vpop.permute.xlu0 %1939
        %1942 = vset.pattern.permute.xlu0 3
        %1943 = vperm.xlu0 %1942, %v268
        %v1944 = vpop.permute.xlu0 %1943
        %1946 = vset.pattern.permute.xlu0 3
        %1947 = vperm.xlu0 %1946, %v269
        %v1948 = vpop.permute.xlu0 %1947
        %1950 = vset.pattern.permute.xlu0 3
        %1951 = vperm.xlu0 %1950, %v270
        %v1952 = vpop.permute.xlu0 %1951
        %1954 = vset.pattern.permute.xlu0 3
        %1955 = vperm.xlu0 %1954, %v271
        %v1956 = vpop.permute.xlu0 %1955
        %1958 = vset.pattern.permute.xlu0 3
        %1959 = vperm.xlu0 %1958, %v272
        %v1960 = vpop.permute.xlu0 %1959
        %1962 = vset.pattern.permute.xlu0 3
        %1963 = vperm.xlu0 %1962, %v273
        %v1964 = vpop.permute.xlu0 %1963
        %1966 = vset.pattern.permute.xlu0 3
        %1967 = vperm.xlu0 %1966, %v274
        %v1968 = vpop.permute.xlu0 %1967
        %v1970 = vadd.f32 %v1922, %v1940
        %v1971 = vadd.f32 %v1923, %v1940
        %v1972 = vadd.f32 %v1924, %v1944
        %v1973 = vadd.f32 %v1925, %v1944
        %v1974 = vadd.f32 %v1926, %v1948
        %v1975 = vadd.f32 %v1927, %v1948
        %v1976 = vadd.f32 %v1928, %v1952
        %v1977 = vadd.f32 %v1929, %v1952
        %v1978 = vadd.f32 %v1930, %v1956
        %v1979 = vadd.f32 %v1931, %v1956
        %v1980 = vadd.f32 %v1932, %v1960
        %v1981 = vadd.f32 %v1933, %v1960
        %v1982 = vadd.f32 %v1934, %v1964
        %v1983 = vadd.f32 %v1935, %v1964
        %v1984 = vadd.f32 %v1936, %v1968
        %v1985 = vadd.f32 %v1937, %v1968
        %1986 = vst [vmem:[%s244] sm:$0xff] %v1970
        %1987 = vst [vmem:[%s244 + $0x8] sm:$0xff] %v1971
        %1988 = vst [vmem:[%s244 + $0x10] sm:$0xff] %v1972
        %1989 = vst [vmem:[%s244 + $0x18] sm:$0xff] %v1973
        %1990 = vst [vmem:[%s244 + $0x20] sm:$0xff] %v1974
        %1991 = vst [vmem:[%s244 + $0x28] sm:$0xff] %v1975
        %1992 = vst [vmem:[%s244 + $0x30] sm:$0xff] %v1976
        %1993 = vst [vmem:[%s244 + $0x38] sm:$0xff] %v1977
        %1994 = vst [vmem:[%s244 + $0x40] sm:$0xff] %v1978
        %1995 = vst [vmem:[%s244 + $0x48] sm:$0xff] %v1979
        %1996 = vst [vmem:[%s244 + $0x50] sm:$0xff] %v1980
        %1997 = vst [vmem:[%s244 + $0x58] sm:$0xff] %v1981
        %1998 = vst [vmem:[%s244 + $0x60] sm:$0xff] %v1982
        %1999 = vst [vmem:[%s244 + $0x68] sm:$0xff] %v1983
        %2000 = vst [vmem:[%s244 + $0x70] sm:$0xff] %v1984
        %2001 = vst [vmem:[%s244 + $0x78] sm:$0xff] %v1985
        %s2002 = sand.u32 %s159, 1
        %s2003 = scalar_lea.sflag [#allocation5], %s2002
        %s2004 = sand.u32 %s159, 1
        %s2005 = smul.addr %s2004, 128
        %s2006 = scalar_lea.vmem [#allocation4], %s2005
        // Predicated region
        $region59: #{tpu_custom_call.1} parent=43 // pred_check
          %p2007 = pneg %p169
        $region60: #{tpu_custom_call.1} parent=43 // pred_check_branch
          %2009 = sbr.rel (%p2007) target = $region62
        $region61: #{tpu_custom_call.1} parent=43 // pred_region
          %2011 = vsyncadd %s2003, 0
          %s2012 = smul.addr %s20, 16
          %s2013 = smul.addr %s2012, 8
          %s2014 = scalar_lea.hbm %s6, %s2013
          %s2015 = sshll.u32 %s2006, 4
          %s2016 = int_to_ptr.vmem [resolvable:$true] %s2015
          %s2017 = sshll.u32 %s2014, 4
          %s2018 = int_to_ptr.hbm [resolvable:$true] %s2017
          %2023 = dma.vmem_to_hbm [thread:$0]  %s2016, 2048, %s2018, %s2003, 256, 256, 16
        $region62: #{tpu_custom_call.1} parent=43 // pred_fallthru
          _
      $region44: #{tpu_custom_call.1} parent=5 // pred_fallthru
        _
      %p2024 = scmp.le.s32.totalorder 2, %s15
      // Predicated region
      $region63: #{tpu_custom_call.1} parent=5 // pred_check
        %p2025 = pneg %p2024
      $region64: #{tpu_custom_call.1} parent=5 // pred_check_branch
        %2027 = sbr.rel (%p2025) target = $region66
      $region65: #{tpu_custom_call.1} parent=5 // pred_region
        %s2028 = ssub.s32 %s15, 2
        // Predicated region
        $region67: #{tpu_custom_call.1} parent=65 // pred_check
          %p2029 = pneg %p175
        $region68: #{tpu_custom_call.1} parent=65 // pred_check_branch
          %2031 = sbr.rel (%p2029) target = $region70
        $region69: #{tpu_custom_call.1} parent=65 // pred_region
          %s2032 = sand.u32 %s160, 1
          %s2033 = scalar_lea.sflag [#allocation5], %s2032
          %s2034 = sand.u32 %s160, 1
          %s2035 = smul.addr %s2034, 128
          %s2036 = scalar_lea.vmem [#allocation4], %s2035
          %2038 = dma.done %s2033, 2048
        $region70: #{tpu_custom_call.1} parent=65 // pred_fallthru
          _
      $region66: #{tpu_custom_call.1} parent=5 // pred_fallthru
        _
    $region6: #{tpu_custom_call.1} parent=1 // loop_footer
      %s19 = sadd.s32 1, %s15
    $region7: #{tpu_custom_call.1} parent=1 // loop_footer_branch
      %14 = sbr.rel target = $region3
    $region8: #{tpu_custom_call.1} parent=1 // loop_exit
      _
    %2039 = vsyncpa [#allocation5], 1
    %s2040 = scalar_lea.sflag [#allocation5], 1
    %2041 = vsyncpa %s2040, 1

</llo_original>
